<compile_context>
chip_gen: v6e
topology: v6e:2x2x1
jax: 0.10.0
libtpu: 0.0.40
codegen_flags: <defaults>
</compile_context>

<pallas_src>
import functools

import jax
import jax.numpy as jnp
from jax import lax
from jax.experimental import pallas as pl
from jax.experimental.pallas import tpu as pltpu


def bottleneck_kernel(x_ref, w1_ref, b1_ref, w2_ref, b2_ref, w3_ref, b3_ref,
                      ml_ref, mr_ref, o_ref, h1p_ref, *, W):
    # Shapes:
    #   x_ref   : (1, H*W, Cin)       input image, spatial dims flattened row-major
    #   w1_ref  : (Cin, width)        conv1 1x1  (bn1 scale folded in), compute dtype
    #   w2_ref  : (3*width, 3*width)  conv2 3x3 repacked: rows=(dy,cin), cols=(dx,cout),
    #                                 bn2 scale folded in
    #   w3_ref  : (width, Cout)       conv3 1x1  (bn3 scale folded in)
    #   b*_ref  : (1, C)              folded-BN shifts, f32
    #   ml_ref/mr_ref : (H*W, 1) f32  masks zeroing the dx=0 / dx=2 taps at the
    #                                 left / right image border
    #   o_ref   : (1, H*W, Cout)
    #   h1p_ref : (H*W + 2*W, width)  conv2 input padded by one image row each side
    HW = x_ref.shape[1]
    width = w1_ref.shape[1]
    cdt = w1_ref.dtype

    x2 = x_ref[0]                                              # (HW, Cin)

    # ---- conv1 (1x1) + bn1 + relu -----------------------------------------
    h1 = jnp.dot(x2.astype(cdt), w1_ref[...],
                 preferred_element_type=jnp.float32)
    h1 = jnp.maximum(h1 + b1_ref[...], 0.0)                    # (HW, width) f32

    # ---- conv2 (3x3, stride 1, pad 1) + bn2 + relu ------------------------
    # Zero only the two padding bands (2*W rows), not the whole scratch.  Done
    # every grid step so the kernel stays correct when the batch axis is
    # sharded across TensorCores (each core owns a separate scratch).
    zpad = jnp.zeros((W, width), cdt)
    h1p_ref[0:W] = zpad
    h1p_ref[HW + W:HW + 2 * W] = zpad
    h1p_ref[W:HW + W] = h1.astype(cdt)

    # im2col along dy only (leading-axis slices, no reshapes): K = 3*width.
    # One MXU matmul produces all three dx contributions at once (N = 3*width).
    tap = jnp.concatenate(
        [h1p_ref[0:HW], h1p_ref[W:HW + W], h1p_ref[2 * W:HW + 2 * W]], axis=-1)
    g = jnp.dot(tap, w2_ref[...], preferred_element_type=jnp.float32)
    g0 = g[:, 0:width]           # dx = 0 (left tap)
    g1 = g[:, width:2 * width]   # dx = 1 (center)
    g2 = g[:, 2 * width:]        # dx = 2 (right tap)

    # Resolve dx with +-1 row shifts in flattened space + border masks.
    zrow = jnp.zeros((1, width), jnp.float32)
    g0s = ml_ref[...] * jnp.concatenate([zrow, g0[:HW - 1]], axis=0)
    g2s = mr_ref[...] * jnp.concatenate([g2[1:], zrow], axis=0)
    h2 = jnp.maximum(g0s + g1 + g2s + b2_ref[...], 0.0)        # (HW, width) f32

    # ---- conv3 (1x1) + bn3 + residual add + relu --------------------------
    h3 = jnp.dot(h2.astype(cdt), w3_ref[...],
                 preferred_element_type=jnp.float32)
    out = jnp.maximum(h3 + b3_ref[...] + x2.astype(jnp.float32), 0.0)
    o_ref[0] = out.astype(o_ref.dtype)


def bottleneck_pallas(x_nhwc, w1, s1, b1, w2, s2, b2, w3, s3, b3,
                      compute_dtype=jnp.float32):
    """Bottleneck forward (stride=1, groups=1, downsample=None), eval-mode BN.

    compute_dtype is the MXU input dtype (bf16 recommended on v6e/v7x);
    accumulation and the residual add stay in f32.
    """
    N, H, W, Cin = x_nhwc.shape
    width = w1.shape[1]
    Cout = w3.shape[1]
    assert Cin == Cout, "downsample=None requires in_channel == out_channel*expansion"
    HW = H * W

    # Fold BN scales into the conv weights (kernel only adds the shift).
    w1f = (w1 * s1[None, :]).astype(compute_dtype)
    w2s = w2 * s2[None, None, None, :]                       # (dy, dx, cin, cout)
    w2r = jnp.transpose(w2s, (0, 2, 1, 3)).reshape(3 * width, 3 * width)
    w2r = w2r.astype(compute_dtype)                          # rows=(dy,cin) cols=(dx,cout)
    w3f = (w3 * s3[None, :]).astype(compute_dtype)
    b1r = b1.reshape(1, width).astype(jnp.float32)
    b2r = b2.reshape(1, width).astype(jnp.float32)
    b3r = b3.reshape(1, Cout).astype(jnp.float32)

    # Precomputed border masks for the dx = 0 / dx = 2 taps.
    col = jnp.arange(HW, dtype=jnp.int32) % W
    m_l = (col != 0).astype(jnp.float32).reshape(HW, 1)
    m_r = (col != W - 1).astype(jnp.float32).reshape(HW, 1)

    x2 = x_nhwc.reshape(N, HW, Cin)        # flatten spatial dims outside the kernel

    kernel = functools.partial(bottleneck_kernel, W=W)
    full = lambda a: pl.BlockSpec(a.shape, lambda n: (0,) * a.ndim)

    out2 = pl.pallas_call(
        kernel,
        out_shape=jax.ShapeDtypeStruct((N, HW, Cout), x_nhwc.dtype),
        grid_spec=pltpu.PrefetchScalarGridSpec(
            num_scalar_prefetch=0,
            grid=(N,),
            in_specs=[
                pl.BlockSpec((1, HW, Cin), lambda n: (n, 0, 0)),
                full(w1f), full(b1r),
                full(w2r), full(b2r),
                full(w3f), full(b3r),
                full(m_l), full(m_r),
            ],
            out_specs=pl.BlockSpec((1, HW, Cout), lambda n: (n, 0, 0)),
            scratch_shapes=[pltpu.VMEM((HW + 2 * W, width), compute_dtype)],
        ),
        compiler_params=pltpu.CompilerParams(
            dimension_semantics=("parallel",)),
    )(x2, w1f, b1r, w2r, b2r, w3f, b3r, m_l, m_r)

    return out2.reshape(N, H, W, Cout)


# ------------------------ parameter construction ---------------------------

def fold_bn(gamma, beta, mean, var, eps=1e-5):
    scale = gamma / jnp.sqrt(var + eps)
    shift = beta - mean * scale
    return scale, shift


def make_params(key, in_channel, out_channel, width_per_group=64, groups=1):
    expansion = 4
    width = int(out_channel * (width_per_group / 64.0)) * groups
    cout = out_channel * expansion
    ks = jax.random.split(key, 6)

    def bn_params(k, c):
        k1, k2, k3, k4 = jax.random.split(k, 4)
        gamma = jax.random.uniform(k1, (c,), jnp.float32, 0.5, 1.5)
        beta = 0.1 * jax.random.normal(k2, (c,), jnp.float32)
        mean = 0.1 * jax.random.normal(k3, (c,), jnp.float32)
        var = jax.random.uniform(k4, (c,), jnp.float32, 0.5, 1.5)
        return fold_bn(gamma, beta, mean, var)

    # Conv weights stored as (Cin, Cout) for 1x1 and HWIO (3, 3, Cin, Cout) for 3x3.
    w1 = 0.1 * jax.random.normal(ks[0], (in_channel, width), jnp.float32)
    w2 = 0.1 * jax.random.normal(ks[1], (3, 3, width, width), jnp.float32)
    w3 = 0.1 * jax.random.normal(ks[2], (width, cout), jnp.float32)
    s1, b1 = bn_params(ks[3], width)
    s2, b2 = bn_params(ks[4], width)
    s3, b3 = bn_params(ks[5], cout)
    return (w1, s1, b1, w2, s2, b2, w3, s3, b3)


# ------------------------ pure-JAX reference (eval-mode BN) -----------------

def bottleneck_ref(x_nhwc, w1, s1, b1, w2, s2, b2, w3, s3, b3):
    dn = ("NHWC", "HWIO", "NHWC")
    prec = lax.Precision.HIGHEST
    h = lax.conv_general_dilated(x_nhwc, w1[None, None], (1, 1), "VALID",
                                 dimension_numbers=dn, precision=prec)
    h = jnp.maximum(h * s1 + b1, 0.0)
    h = lax.conv_general_dilated(h, w2, (1, 1), "SAME",
                                 dimension_numbers=dn, precision=prec)
    h = jnp.maximum(h * s2 + b2, 0.0)
    h = lax.conv_general_dilated(h, w3[None, None], (1, 1), "VALID",
                                 dimension_numbers=dn, precision=prec)
    h = h * s3 + b3
    return jnp.maximum(h + x_nhwc, 0.0)


if __name__ == "__main__":
    key = jax.random.PRNGKey(0)
    k_x, k_p = jax.random.split(key)

    # Bottleneck(in_channel=256, out_channel=64): width=64, Cout=256 — a standard
    # ResNet-50 identity block (stride=1, groups=1, downsample=None) at a small
    # 16x16 spatial extent (realistic channel counts so the 128-lane datapath and
    # MXU are actually exercised).
    N, Cin, Hs, Ws = 2, 256, 16, 16
    out_channel = 64

    x_nchw = jax.random.normal(k_x, (N, Cin, Hs, Ws), jnp.float32)
    params = make_params(k_p, Cin, out_channel)

    # layout: NCHW (PyTorch) -> NHWC (channels on the lane axis) for the kernel.
    x_nhwc = jnp.transpose(x_nchw, (0, 2, 3, 1))

    ref_nhwc = bottleneck_ref(x_nhwc, *params)

    # f32 path (v5e or accuracy-critical use).
    out_f32 = jax.block_until_ready(bottleneck_pallas(x_nhwc, *params))
    err_f32 = float(jnp.max(jnp.abs(out_f32 - ref_nhwc)))
    assert jnp.allclose(out_f32, ref_nhwc, atol=1e-3, rtol=1e-3), err_f32

    # bf16 MXU path (v6e / v7x): bf16 matmul inputs, f32 accumulation + f32 residual.
    out_bf16 = jax.block_until_ready(
        bottleneck_pallas(x_nhwc, *params, compute_dtype=jnp.bfloat16))
    err_bf16 = float(jnp.max(jnp.abs(out_bf16 - ref_nhwc)))
    assert err_bf16 < 1.0, err_bf16

    out_nchw = jnp.transpose(out_f32, (0, 3, 1, 2))  # back to PyTorch NCHW layout
    assert out_nchw.shape == (N, Cin, Hs, Ws)

    print("KERNEL_OK")
</pallas_src>

<mosaic_0001>
module attributes {stable_mosaic.version = 11 : i64} {
  func.func @bottleneck_kernel(%arg0: i32, %arg1: memref<1x256x256xf32, #tpu.memory_space<vmem>>, %arg2: memref<256x64xf32, #tpu.memory_space<vmem>>, %arg3: memref<1x64xf32, #tpu.memory_space<vmem>>, %arg4: memref<192x192xf32, #tpu.memory_space<vmem>>, %arg5: memref<1x64xf32, #tpu.memory_space<vmem>>, %arg6: memref<64x256xf32, #tpu.memory_space<vmem>>, %arg7: memref<1x256xf32, #tpu.memory_space<vmem>>, %arg8: memref<256x1xf32, #tpu.memory_space<vmem>>, %arg9: memref<256x1xf32, #tpu.memory_space<vmem>>, %arg10: memref<1x256x256xf32, #tpu.memory_space<vmem>>, %arg11: memref<288x64xf32, #tpu.memory_space<vmem>>) attributes {dimension_semantics = [#tpu.dimension_semantics<parallel>], iteration_bounds = array<i64: 2>, scalar_prefetch = 0 : i64, scratch_operands = 1 : i64, tpu.core_type = #tpu.core_type<tc>, window_params = [{transform_indices = @transform_0, window_bounds = array<i64: 1, 256, 256>}, {pipeline_mode = #tpu.pipeline_mode<synchronous>, transform_indices = @transform_1, window_bounds = array<i64: 256, 64>}, {pipeline_mode = #tpu.pipeline_mode<synchronous>, transform_indices = @transform_2, window_bounds = array<i64: 1, 64>}, {pipeline_mode = #tpu.pipeline_mode<synchronous>, transform_indices = @transform_3, window_bounds = array<i64: 192, 192>}, {pipeline_mode = #tpu.pipeline_mode<synchronous>, transform_indices = @transform_4, window_bounds = array<i64: 1, 64>}, {pipeline_mode = #tpu.pipeline_mode<synchronous>, transform_indices = @transform_5, window_bounds = array<i64: 64, 256>}, {pipeline_mode = #tpu.pipeline_mode<synchronous>, transform_indices = @transform_6, window_bounds = array<i64: 1, 256>}, {pipeline_mode = #tpu.pipeline_mode<synchronous>, transform_indices = @transform_7, window_bounds = array<i64: 256, 1>}, {pipeline_mode = #tpu.pipeline_mode<synchronous>, transform_indices = @transform_8, window_bounds = array<i64: 256, 1>}, {transform_indices = @transform_9, window_bounds = array<i64: 1, 256, 256>}]} {
    %c0 = arith.constant 0 : index
    %c0_0 = arith.constant 0 : index
    %c0_1 = arith.constant 0 : index
    %0 = vector.load %arg1[%c0, %c0_0, %c0_1] : memref<1x256x256xf32, #tpu.memory_space<vmem>>, vector<1x256x256xf32>
    %1 = vector.shape_cast %0 : vector<1x256x256xf32> to vector<256x256xf32>
    %c0_2 = arith.constant 0 : index
    %c0_3 = arith.constant 0 : index
    %2 = vector.load %arg2[%c0_2, %c0_3] : memref<256x64xf32, #tpu.memory_space<vmem>>, vector<256x64xf32>
    %cst = arith.constant dense<0.000000e+00> : vector<256x64xf32>
    %3 = tpu.matmul %1, %2, %cst {dimension_numbers = #tpu.dot_dimension_numbers<[1], [0], [0], [1], [0, 0, 1, 1], [], []>} : vector<256x256xf32>, vector<256x64xf32>, vector<256x64xf32> -> vector<256x64xf32>
    %c0_4 = arith.constant 0 : index
    %c0_5 = arith.constant 0 : index
    %4 = vector.load %arg3[%c0_4, %c0_5] : memref<1x64xf32, #tpu.memory_space<vmem>>, vector<1x64xf32>
    %5 = vector.broadcast %4 : vector<1x64xf32> to vector<256x64xf32>
    %6 = arith.addf %3, %5 : vector<256x64xf32>
    %cst_6 = arith.constant 0.000000e+00 : f32
    %7 = vector.broadcast %cst_6 : f32 to vector<256x64xf32>
    %8 = arith.maximumf %6, %7 : vector<256x64xf32>
    %cst_7 = arith.constant 0.000000e+00 : f32
    %9 = vector.broadcast %cst_7 : f32 to vector<16x64xf32>
    %c0_8 = arith.constant 0 : index
    %c0_9 = arith.constant 0 : index
    %10 = vector.load %arg11[%c0_8, %c0_9] : memref<288x64xf32, #tpu.memory_space<vmem>>, vector<16x64xf32>
    tpu.vector_store %arg11[%c0_8, %c0_9], %9 {strides = array<i32>} : memref<288x64xf32, #tpu.memory_space<vmem>>, vector<16x64xf32>,
    %c272 = arith.constant 272 : index
    %c0_10 = arith.constant 0 : index
    %11 = vector.load %arg11[%c272, %c0_10] : memref<288x64xf32, #tpu.memory_space<vmem>>, vector<16x64xf32>
    tpu.vector_store %arg11[%c272, %c0_10], %9 {strides = array<i32>} : memref<288x64xf32, #tpu.memory_space<vmem>>, vector<16x64xf32>,
    %c16 = arith.constant 16 : index
    %c0_11 = arith.constant 0 : index
    %12 = vector.load %arg11[%c16, %c0_11] : memref<288x64xf32, #tpu.memory_space<vmem>>, vector<256x64xf32>
    tpu.vector_store %arg11[%c16, %c0_11], %8 {strides = array<i32>} : memref<288x64xf32, #tpu.memory_space<vmem>>, vector<256x64xf32>,
    %c0_12 = arith.constant 0 : index
    %c0_13 = arith.constant 0 : index
    %13 = vector.load %arg11[%c0_12, %c0_13] : memref<288x64xf32, #tpu.memory_space<vmem>>, vector<256x64xf32>
    %c16_14 = arith.constant 16 : index
    %c0_15 = arith.constant 0 : index
    %14 = vector.load %arg11[%c16_14, %c0_15] : memref<288x64xf32, #tpu.memory_space<vmem>>, vector<256x64xf32>
    %c32 = arith.constant 32 : index
    %c0_16 = arith.constant 0 : index
    %15 = vector.load %arg11[%c32, %c0_16] : memref<288x64xf32, #tpu.memory_space<vmem>>, vector<256x64xf32>
    %16 = tpu.concatenate %13, %14, %15 in 1 : vector<256x64xf32>, vector<256x64xf32>, vector<256x64xf32> -> vector<256x192xf32>
    %c0_17 = arith.constant 0 : index
    %c0_18 = arith.constant 0 : index
    %17 = vector.load %arg4[%c0_17, %c0_18] : memref<192x192xf32, #tpu.memory_space<vmem>>, vector<192x192xf32>
    %cst_19 = arith.constant dense<0.000000e+00> : vector<256x192xf32>
    %18 = tpu.matmul %16, %17, %cst_19 {dimension_numbers = #tpu.dot_dimension_numbers<[1], [0], [0], [1], [0, 0, 1, 1], [], []>} : vector<256x192xf32>, vector<192x192xf32>, vector<256x192xf32> -> vector<256x192xf32>
    %19 = vector.extract_strided_slice %18 {offsets = [0, 0], sizes = [256, 64], strides = [1, 1]} : vector<256x192xf32> to vector<256x64xf32>
    %20 = vector.extract_strided_slice %18 {offsets = [0, 64], sizes = [256, 64], strides = [1, 1]} : vector<256x192xf32> to vector<256x64xf32>
    %21 = vector.extract_strided_slice %18 {offsets = [0, 128], sizes = [256, 64], strides = [1, 1]} : vector<256x192xf32> to vector<256x64xf32>
    %cst_20 = arith.constant 0.000000e+00 : f32
    %22 = vector.broadcast %cst_20 : f32 to vector<1x64xf32>
    %c0_21 = arith.constant 0 : index
    %c0_22 = arith.constant 0 : index
    %23 = vector.load %arg8[%c0_21, %c0_22] : memref<256x1xf32, #tpu.memory_space<vmem>>, vector<256x1xf32>
    %24 = vector.extract_strided_slice %19 {offsets = [0, 0], sizes = [255, 64], strides = [1, 1]} : vector<256x64xf32> to vector<255x64xf32>
    %25 = tpu.concatenate %22, %24 in 0 : vector<1x64xf32>, vector<255x64xf32> -> vector<256x64xf32>
    %26 = vector.broadcast %23 : vector<256x1xf32> to vector<256x64xf32>
    %27 = arith.mulf %26, %25 : vector<256x64xf32>
    %c0_23 = arith.constant 0 : index
    %c0_24 = arith.constant 0 : index
    %28 = vector.load %arg9[%c0_23, %c0_24] : memref<256x1xf32, #tpu.memory_space<vmem>>, vector<256x1xf32>
    %29 = vector.extract_strided_slice %21 {offsets = [1, 0], sizes = [255, 64], strides = [1, 1]} : vector<256x64xf32> to vector<255x64xf32>
    %30 = tpu.concatenate %29, %22 in 0 : vector<255x64xf32>, vector<1x64xf32> -> vector<256x64xf32>
    %31 = vector.broadcast %28 : vector<256x1xf32> to vector<256x64xf32>
    %32 = arith.mulf %31, %30 : vector<256x64xf32>
    %33 = arith.addf %27, %20 : vector<256x64xf32>
    %34 = arith.addf %33, %32 : vector<256x64xf32>
    %c0_25 = arith.constant 0 : index
    %c0_26 = arith.constant 0 : index
    %35 = vector.load %arg5[%c0_25, %c0_26] : memref<1x64xf32, #tpu.memory_space<vmem>>, vector<1x64xf32>
    %36 = vector.broadcast %35 : vector<1x64xf32> to vector<256x64xf32>
    %37 = arith.addf %34, %36 : vector<256x64xf32>
    %cst_27 = arith.constant 0.000000e+00 : f32
    %38 = vector.broadcast %cst_27 : f32 to vector<256x64xf32>
    %39 = arith.maximumf %37, %38 : vector<256x64xf32>
    %c0_28 = arith.constant 0 : index
    %c0_29 = arith.constant 0 : index
    %40 = vector.load %arg6[%c0_28, %c0_29] : memref<64x256xf32, #tpu.memory_space<vmem>>, vector<64x256xf32>
    %cst_30 = arith.constant dense<0.000000e+00> : vector<256x256xf32>
    %41 = tpu.matmul %39, %40, %cst_30 {dimension_numbers = #tpu.dot_dimension_numbers<[1], [0], [0], [1], [0, 0, 1, 1], [], []>} : vector<256x64xf32>, vector<64x256xf32>, vector<256x256xf32> -> vector<256x256xf32>
    %c0_31 = arith.constant 0 : index
    %c0_32 = arith.constant 0 : index
    %42 = vector.load %arg7[%c0_31, %c0_32] : memref<1x256xf32, #tpu.memory_space<vmem>>, vector<1x256xf32>
    %43 = vector.broadcast %42 : vector<1x256xf32> to vector<256x256xf32>
    %44 = arith.addf %41, %43 : vector<256x256xf32>
    %45 = arith.addf %44, %1 : vector<256x256xf32>
    %cst_33 = arith.constant 0.000000e+00 : f32
    %46 = vector.broadcast %cst_33 : f32 to vector<256x256xf32>
    %47 = arith.maximumf %45, %46 : vector<256x256xf32>
    %c0_34 = arith.constant 0 : index
    %c0_35 = arith.constant 0 : index
    %c0_36 = arith.constant 0 : index
    %48 = vector.load %arg10[%c0_34, %c0_35, %c0_36] : memref<1x256x256xf32, #tpu.memory_space<vmem>>, vector<1x256x256xf32>
    %49 = vector.shape_cast %48 : vector<1x256x256xf32> to vector<256x256xf32>
    %50 = vector.shape_cast %47 : vector<256x256xf32> to vector<1x256x256xf32>
    tpu.vector_store %arg10[%c0_34, %c0_35, %c0_36], %50 {strides = array<i32>} : memref<1x256x256xf32, #tpu.memory_space<vmem>>, vector<1x256x256xf32>,
    return
  }
  func.func @transform_0(%arg0: i32) -> (i32, i32, i32) {
    %c0_i32 = arith.constant 0 : i32
    %c0_i32_0 = arith.constant 0 : i32
    %c0_i32_1 = arith.constant 0 : i32
    return %arg0, %c0_i32, %c0_i32_0 : i32, i32, i32
  }
  func.func @transform_1(%arg0: i32) -> (i32, i32) {
    %c0_i32 = arith.constant 0 : i32
    %c0_i32_0 = arith.constant 0 : i32
    %c0_i32_1 = arith.constant 0 : i32
    return %c0_i32, %c0_i32_0 : i32, i32
  }
  func.func @transform_2(%arg0: i32) -> (i32, i32) {
    %c0_i32 = arith.constant 0 : i32
    %c0_i32_0 = arith.constant 0 : i32
    %c0_i32_1 = arith.constant 0 : i32
    return %c0_i32, %c0_i32_0 : i32, i32
  }
  func.func @transform_3(%arg0: i32) -> (i32, i32) {
    %c0_i32 = arith.constant 0 : i32
    %c0_i32_0 = arith.constant 0 : i32
    %c0_i32_1 = arith.constant 0 : i32
    return %c0_i32, %c0_i32_0 : i32, i32
  }
  func.func @transform_4(%arg0: i32) -> (i32, i32) {
    %c0_i32 = arith.constant 0 : i32
    %c0_i32_0 = arith.constant 0 : i32
    %c0_i32_1 = arith.constant 0 : i32
    return %c0_i32, %c0_i32_0 : i32, i32
  }
  func.func @transform_5(%arg0: i32) -> (i32, i32) {
    %c0_i32 = arith.constant 0 : i32
    %c0_i32_0 = arith.constant 0 : i32
    %c0_i32_1 = arith.constant 0 : i32
    return %c0_i32, %c0_i32_0 : i32, i32
  }
  func.func @transform_6(%arg0: i32) -> (i32, i32) {
    %c0_i32 = arith.constant 0 : i32
    %c0_i32_0 = arith.constant 0 : i32
    %c0_i32_1 = arith.constant 0 : i32
    return %c0_i32, %c0_i32_0 : i32, i32
  }
  func.func @transform_7(%arg0: i32) -> (i32, i32) {
    %c0_i32 = arith.constant 0 : i32
    %c0_i32_0 = arith.constant 0 : i32
    %c0_i32_1 = arith.constant 0 : i32
    return %c0_i32, %c0_i32_0 : i32, i32
  }
  func.func @transform_8(%arg0: i32) -> (i32, i32) {
    %c0_i32 = arith.constant 0 : i32
    %c0_i32_0 = arith.constant 0 : i32
    %c0_i32_1 = arith.constant 0 : i32
    return %c0_i32, %c0_i32_0 : i32, i32
  }
  func.func @transform_9(%arg0: i32) -> (i32, i32, i32) {
    %c0_i32 = arith.constant 0 : i32
    %c0_i32_0 = arith.constant 0 : i32
    %c0_i32_1 = arith.constant 0 : i32
    return %arg0, %c0_i32, %c0_i32_0 : i32, i32, i32
  }
}

</mosaic_0001>

<llo_original>
// kernel: tpu_custom_call.1
$region0: #{tpu_custom_call.1}
  #allocation0 [shape = 'u32[]', space=smem, size = 0x4, offset = 0x4, fixed_abs, tag = 'smem constant byte address 0x4 - core index']
  #allocation1 [shape = 'u32[144,128]{1,0:T(1,128)}', space=vmem, size = 0x12000, scoped, tag = 'internal scratch']
  #allocation2 [shape = 'f32[288,64]{1,0:T(8,128)}', space=vmem, size = 0x24000, scoped, tag = 'scratch operand']
  %s0 = inlined_call_operand.hbm [shape: f32[2,256,256], index: 0, kind: input, shape index: {}]
  %s1 = inlined_call_operand.vmem [shape: f32[256,64], index: 1, kind: input, shape index: {}]
  %s2 = inlined_call_operand.vmem [shape: f32[1,64], index: 2, kind: input, shape index: {}]
  %s3 = inlined_call_operand.vmem [shape: f32[192,192], index: 3, kind: input, shape index: {}]
  %s4 = inlined_call_operand.vmem [shape: f32[1,64], index: 4, kind: input, shape index: {}]
  %s5 = inlined_call_operand.vmem [shape: f32[64,256], index: 5, kind: input, shape index: {}]
  %s6 = inlined_call_operand.vmem [shape: f32[1,256], index: 6, kind: input, shape index: {}]
  %s7 = inlined_call_operand.vmem [shape: f32[256,1], index: 7, kind: input, shape index: {}]
  %s8 = inlined_call_operand.vmem [shape: f32[256,1], index: 8, kind: input, shape index: {}]
  %s9 = inlined_call_operand.hbm [shape: f32[2,256,256], index: 9, kind: output, shape index: {}]
  %s10 = sld [smem:[#allocation0]]
  $region73: #{tpu_custom_call.1} parent=0
    _
  %s12 = ssub.s32 1, %s10
  %s13 = scalar_select 0, %s12, %s10
  $region1: #{tpu_custom_call.1} parent=0
    #allocation3 [shape = 'u8[524288]{0}', space=vmem, size = 0x80000, scoped, tag = 'input window, operand 0']
    #allocation4 [shape = 's32[2]{0}', space=sflag, size = 0x8, scoped, tag = 'scoped memory for tpu_custom_call.1']
    #allocation5 [shape = 's32[2]{0}', space=sflag, size = 0x8, scoped, tag = 'scoped memory for tpu_custom_call.1']
    #allocation6 [shape = 'u8[524288]{0}', space=vmem, size = 0x80000, scoped, tag = 'output window, operand 0']
    %14 = vsyncpa [#allocation4], 0
    %s15 = scalar_lea.sflag [#allocation4], 1
    %16 = vsyncpa %s15, 0
    %17 = vsyncpa [#allocation5], 0
    %s18 = scalar_lea.sflag [#allocation5], 1
    %19 = vsyncpa %s18, 0
    loop: start=0, step=1, limit=4
    $region2: #{tpu_custom_call.1} parent=1 // loop_pre_header
      _
    $region3: #{tpu_custom_call.1} parent=1 // loop_header
      %s21 = sphi 0, %s25
      %p22 = scmp.ge.s32.totalorder %s21, 4
      %s31 = sphi 0, %s33
      %s34 = sphi 0, %s31
      %s35 = sphi 0, %s34
      %s51 = sphi 0, %s35
      %s55 = sphi 0, %s55
      %s57 = sphi 0, %s55
      %s58 = sphi 0, %s57
      %s72 = sphi 0, %s58
      %s76 = sphi 0, %s76
      %s78 = sphi 0, %s76
      %s79 = sphi 0, %s78
      %s93 = sphi 0, %s79
      %s97 = sphi 0, %s97
      %s99 = sphi 0, %s97
      %s100 = sphi 0, %s99
      %s114 = sphi 0, %s100
      %s118 = sphi 0, %s118
      %s120 = sphi 0, %s118
      %s121 = sphi 0, %s120
      %s135 = sphi 0, %s121
      %s139 = sphi 0, %s139
      %s141 = sphi 0, %s139
      %s142 = sphi 0, %s141
      %s156 = sphi 0, %s142
      %s160 = sphi 0, %s160
      %s162 = sphi 0, %s160
      %s163 = sphi 0, %s162
      %s177 = sphi 0, %s163
      %s181 = sphi 0, %s181
      %s183 = sphi 0, %s181
      %s184 = sphi 0, %s183
      %s198 = sphi 0, %s184
      %s202 = sphi 0, %s202
      %s204 = sphi 0, %s202
      %s205 = sphi 0, %s204
      %s219 = sphi 0, %s205
      %s225 = sphi 0, %s227
      %s228 = sphi 0, %s225
      %s229 = sphi 0, %s228
      %s245 = sphi 0, %s229
    $region4: #{tpu_custom_call.1} parent=1 // loop_header_branch
      %24 = sbr.rel (%p22) target = $region8
    $region5: #{tpu_custom_call.1} parent=1 // loop_body
      %s26 = ssub.s32 %s21, 1
      %s27 = ssub.s32 %s21, 2
      %s28 = sadd.s32 %s21, 1
      %s29 = ssub.s32 %s21, %s28
      %p30 = scmp.eq.s32.totalorder %s29, 0
      %s32 = sadd.s32 %s31, 1
      %s33 = scalar_select %p30, %s31, %s32
      %p36 = pneg %p30
      %p37 = scmp.eq.s32.totalorder %s21, 1
      %p38 = por %p36, %p37
      %p39 = scmp.ne.s32.totalorder %s31, %s34
      %p40 = scmp.eq.s32.totalorder %s21, 0
      %p41 = por %p39, %p40
      %p42 = scmp.ne.s32.totalorder %s31, %s34
      %p43 = scmp.eq.s32.totalorder %s26, 1
      %p44 = por %p42, %p43
      %p45 = scmp.ne.s32.totalorder %s34, %s35
      %p46 = scmp.eq.s32.totalorder %s26, 0
      %p47 = por %p45, %p46
      %p48 = scmp.ne.s32.totalorder %s34, %s35
      %p49 = scmp.eq.s32.totalorder %s27, 1
      %p50 = por %p48, %p49
      %p52 = scmp.ne.s32.totalorder %s35, %s51
      %p53 = scmp.eq.s32.totalorder %s27, 0
      %p54 = por %p52, %p53
      %s56 = sadd.s32 %s55, 1
      %p59 = scmp.eq.s32.totalorder %s21, 1
      %p60 = scmp.ne.s32.totalorder %s55, %s57
      %p61 = scmp.eq.s32.totalorder %s21, 0
      %p62 = por %p60, %p61
      %p63 = scmp.ne.s32.totalorder %s55, %s57
      %p64 = scmp.eq.s32.totalorder %s26, 1
      %p65 = por %p63, %p64
      %p66 = scmp.ne.s32.totalorder %s57, %s58
      %p67 = scmp.eq.s32.totalorder %s26, 0
      %p68 = por %p66, %p67
      %p69 = scmp.ne.s32.totalorder %s57, %s58
      %p70 = scmp.eq.s32.totalorder %s27, 1
      %p71 = por %p69, %p70
      %p73 = scmp.ne.s32.totalorder %s58, %s72
      %p74 = scmp.eq.s32.totalorder %s27, 0
      %p75 = por %p73, %p74
      %s77 = sadd.s32 %s76, 1
      %p80 = scmp.eq.s32.totalorder %s21, 1
      %p81 = scmp.ne.s32.totalorder %s76, %s78
      %p82 = scmp.eq.s32.totalorder %s21, 0
      %p83 = por %p81, %p82
      %p84 = scmp.ne.s32.totalorder %s76, %s78
      %p85 = scmp.eq.s32.totalorder %s26, 1
      %p86 = por %p84, %p85
      %p87 = scmp.ne.s32.totalorder %s78, %s79
      %p88 = scmp.eq.s32.totalorder %s26, 0
      %p89 = por %p87, %p88
      %p90 = scmp.ne.s32.totalorder %s78, %s79
      %p91 = scmp.eq.s32.totalorder %s27, 1
      %p92 = por %p90, %p91
      %p94 = scmp.ne.s32.totalorder %s79, %s93
      %p95 = scmp.eq.s32.totalorder %s27, 0
      %p96 = por %p94, %p95
      %s98 = sadd.s32 %s97, 1
      %p101 = scmp.eq.s32.totalorder %s21, 1
      %p102 = scmp.ne.s32.totalorder %s97, %s99
      %p103 = scmp.eq.s32.totalorder %s21, 0
      %p104 = por %p102, %p103
      %p105 = scmp.ne.s32.totalorder %s97, %s99
      %p106 = scmp.eq.s32.totalorder %s26, 1
      %p107 = por %p105, %p106
      %p108 = scmp.ne.s32.totalorder %s99, %s100
      %p109 = scmp.eq.s32.totalorder %s26, 0
      %p110 = por %p108, %p109
      %p111 = scmp.ne.s32.totalorder %s99, %s100
      %p112 = scmp.eq.s32.totalorder %s27, 1
      %p113 = por %p111, %p112
      %p115 = scmp.ne.s32.totalorder %s100, %s114
      %p116 = scmp.eq.s32.totalorder %s27, 0
      %p117 = por %p115, %p116
      %s119 = sadd.s32 %s118, 1
      %p122 = scmp.eq.s32.totalorder %s21, 1
      %p123 = scmp.ne.s32.totalorder %s118, %s120
      %p124 = scmp.eq.s32.totalorder %s21, 0
      %p125 = por %p123, %p124
      %p126 = scmp.ne.s32.totalorder %s118, %s120
      %p127 = scmp.eq.s32.totalorder %s26, 1
      %p128 = por %p126, %p127
      %p129 = scmp.ne.s32.totalorder %s120, %s121
      %p130 = scmp.eq.s32.totalorder %s26, 0
      %p131 = por %p129, %p130
      %p132 = scmp.ne.s32.totalorder %s120, %s121
      %p133 = scmp.eq.s32.totalorder %s27, 1
      %p134 = por %p132, %p133
      %p136 = scmp.ne.s32.totalorder %s121, %s135
      %p137 = scmp.eq.s32.totalorder %s27, 0
      %p138 = por %p136, %p137
      %s140 = sadd.s32 %s139, 1
      %p143 = scmp.eq.s32.totalorder %s21, 1
      %p144 = scmp.ne.s32.totalorder %s139, %s141
      %p145 = scmp.eq.s32.totalorder %s21, 0
      %p146 = por %p144, %p145
      %p147 = scmp.ne.s32.totalorder %s139, %s141
      %p148 = scmp.eq.s32.totalorder %s26, 1
      %p149 = por %p147, %p148
      %p150 = scmp.ne.s32.totalorder %s141, %s142
      %p151 = scmp.eq.s32.totalorder %s26, 0
      %p152 = por %p150, %p151
      %p153 = scmp.ne.s32.totalorder %s141, %s142
      %p154 = scmp.eq.s32.totalorder %s27, 1
      %p155 = por %p153, %p154
      %p157 = scmp.ne.s32.totalorder %s142, %s156
      %p158 = scmp.eq.s32.totalorder %s27, 0
      %p159 = por %p157, %p158
      %s161 = sadd.s32 %s160, 1
      %p164 = scmp.eq.s32.totalorder %s21, 1
      %p165 = scmp.ne.s32.totalorder %s160, %s162
      %p166 = scmp.eq.s32.totalorder %s21, 0
      %p167 = por %p165, %p166
      %p168 = scmp.ne.s32.totalorder %s160, %s162
      %p169 = scmp.eq.s32.totalorder %s26, 1
      %p170 = por %p168, %p169
      %p171 = scmp.ne.s32.totalorder %s162, %s163
      %p172 = scmp.eq.s32.totalorder %s26, 0
      %p173 = por %p171, %p172
      %p174 = scmp.ne.s32.totalorder %s162, %s163
      %p175 = scmp.eq.s32.totalorder %s27, 1
      %p176 = por %p174, %p175
      %p178 = scmp.ne.s32.totalorder %s163, %s177
      %p179 = scmp.eq.s32.totalorder %s27, 0
      %p180 = por %p178, %p179
      %s182 = sadd.s32 %s181, 1
      %p185 = scmp.eq.s32.totalorder %s21, 1
      %p186 = scmp.ne.s32.totalorder %s181, %s183
      %p187 = scmp.eq.s32.totalorder %s21, 0
      %p188 = por %p186, %p187
      %p189 = scmp.ne.s32.totalorder %s181, %s183
      %p190 = scmp.eq.s32.totalorder %s26, 1
      %p191 = por %p189, %p190
      %p192 = scmp.ne.s32.totalorder %s183, %s184
      %p193 = scmp.eq.s32.totalorder %s26, 0
      %p194 = por %p192, %p193
      %p195 = scmp.ne.s32.totalorder %s183, %s184
      %p196 = scmp.eq.s32.totalorder %s27, 1
      %p197 = por %p195, %p196
      %p199 = scmp.ne.s32.totalorder %s184, %s198
      %p200 = scmp.eq.s32.totalorder %s27, 0
      %p201 = por %p199, %p200
      %s203 = sadd.s32 %s202, 1
      %p206 = scmp.eq.s32.totalorder %s21, 1
      %p207 = scmp.ne.s32.totalorder %s202, %s204
      %p208 = scmp.eq.s32.totalorder %s21, 0
      %p209 = por %p207, %p208
      %p210 = scmp.ne.s32.totalorder %s202, %s204
      %p211 = scmp.eq.s32.totalorder %s26, 1
      %p212 = por %p210, %p211
      %p213 = scmp.ne.s32.totalorder %s204, %s205
      %p214 = scmp.eq.s32.totalorder %s26, 0
      %p215 = por %p213, %p214
      %p216 = scmp.ne.s32.totalorder %s204, %s205
      %p217 = scmp.eq.s32.totalorder %s27, 1
      %p218 = por %p216, %p217
      %p220 = scmp.ne.s32.totalorder %s205, %s219
      %p221 = scmp.eq.s32.totalorder %s27, 0
      %p222 = por %p220, %p221
      %s223 = ssub.s32 %s21, %s28
      %p224 = scmp.eq.s32.totalorder %s223, 0
      %s226 = sadd.s32 %s225, 1
      %s227 = scalar_select %p224, %s225, %s226
      %p230 = pneg %p224
      %p231 = scmp.eq.s32.totalorder %s21, 1
      %p232 = por %p230, %p231
      %p233 = scmp.ne.s32.totalorder %s225, %s228
      %p234 = scmp.eq.s32.totalorder %s21, 0
      %p235 = por %p233, %p234
      %p236 = scmp.ne.s32.totalorder %s225, %s228
      %p237 = scmp.eq.s32.totalorder %s26, 1
      %p238 = por %p236, %p237
      %p239 = scmp.ne.s32.totalorder %s228, %s229
      %p240 = scmp.eq.s32.totalorder %s26, 0
      %p241 = por %p239, %p240
      %p242 = scmp.ne.s32.totalorder %s228, %s229
      %p243 = scmp.eq.s32.totalorder %s27, 1
      %p244 = por %p242, %p243
      %p246 = scmp.ne.s32.totalorder %s229, %s245
      %p247 = scmp.eq.s32.totalorder %s27, 0
      %p248 = por %p246, %p247
      %p249 = scmp.le.s32.totalorder 1, %s21
      %p250 = scmp.lt.s32.totalorder %s21, 3
      %p251 = pnand %p249, %p250
      %p252 = pneg %p251
      // Predicated region
      $region9: #{tpu_custom_call.1} parent=5 // pred_check
        _
      $region10: #{tpu_custom_call.1} parent=5 // pred_check_branch
        %254 = sbr.rel (%p251) target = $region12
      $region11: #{tpu_custom_call.1} parent=5 // pred_region
        %s255 = ssub.s32 %s21, 1
        // Predicated region
        $region13: #{tpu_custom_call.1} parent=11 // pred_check
          %p256 = pneg %p68
        $region14: #{tpu_custom_call.1} parent=11 // pred_check_branch
          %258 = sbr.rel (%p256) target = $region16
        $region15: #{tpu_custom_call.1} parent=11 // pred_region
          _
        $region16: #{tpu_custom_call.1} parent=11 // pred_fallthru
          _
        // Predicated region
        $region17: #{tpu_custom_call.1} parent=11 // pred_check
          %p259 = pneg %p89
        $region18: #{tpu_custom_call.1} parent=11 // pred_check_branch
          %261 = sbr.rel (%p259) target = $region20
        $region19: #{tpu_custom_call.1} parent=11 // pred_region
          _
        $region20: #{tpu_custom_call.1} parent=11 // pred_fallthru
          _
        // Predicated region
        $region21: #{tpu_custom_call.1} parent=11 // pred_check
          %p262 = pneg %p110
        $region22: #{tpu_custom_call.1} parent=11 // pred_check_branch
          %264 = sbr.rel (%p262) target = $region24
        $region23: #{tpu_custom_call.1} parent=11 // pred_region
          _
        $region24: #{tpu_custom_call.1} parent=11 // pred_fallthru
          _
        // Predicated region
        $region25: #{tpu_custom_call.1} parent=11 // pred_check
          %p265 = pneg %p131
        $region26: #{tpu_custom_call.1} parent=11 // pred_check_branch
          %267 = sbr.rel (%p265) target = $region28
        $region27: #{tpu_custom_call.1} parent=11 // pred_region
          _
        $region28: #{tpu_custom_call.1} parent=11 // pred_fallthru
          _
        // Predicated region
        $region29: #{tpu_custom_call.1} parent=11 // pred_check
          %p268 = pneg %p152
        $region30: #{tpu_custom_call.1} parent=11 // pred_check_branch
          %270 = sbr.rel (%p268) target = $region32
        $region31: #{tpu_custom_call.1} parent=11 // pred_region
          _
        $region32: #{tpu_custom_call.1} parent=11 // pred_fallthru
          _
        // Predicated region
        $region33: #{tpu_custom_call.1} parent=11 // pred_check
          %p271 = pneg %p173
        $region34: #{tpu_custom_call.1} parent=11 // pred_check_branch
          %273 = sbr.rel (%p271) target = $region36
        $region35: #{tpu_custom_call.1} parent=11 // pred_region
          _
        $region36: #{tpu_custom_call.1} parent=11 // pred_fallthru
          _
        // Predicated region
        $region37: #{tpu_custom_call.1} parent=11 // pred_check
          %p274 = pneg %p194
        $region38: #{tpu_custom_call.1} parent=11 // pred_check_branch
          %276 = sbr.rel (%p274) target = $region40
        $region39: #{tpu_custom_call.1} parent=11 // pred_region
          _
        $region40: #{tpu_custom_call.1} parent=11 // pred_fallthru
          _
        // Predicated region
        $region41: #{tpu_custom_call.1} parent=11 // pred_check
          %p277 = pneg %p215
        $region42: #{tpu_custom_call.1} parent=11 // pred_check_branch
          %279 = sbr.rel (%p277) target = $region44
        $region43: #{tpu_custom_call.1} parent=11 // pred_region
          _
        $region44: #{tpu_custom_call.1} parent=11 // pred_fallthru
          _
      $region12: #{tpu_custom_call.1} parent=5 // pred_fallthru
        _
      %p280 = scmp.lt.s32.totalorder %s21, 2
      // Predicated region
      $region45: #{tpu_custom_call.1} parent=5 // pred_check
        %p281 = pneg %p280
      $region46: #{tpu_custom_call.1} parent=5 // pred_check_branch
        %283 = sbr.rel (%p281) target = $region48
      $region47: #{tpu_custom_call.1} parent=5 // pred_region
        // Predicated region
        $region49: #{tpu_custom_call.1} parent=47 // pred_check
          %p284 = pneg %p41
        $region50: #{tpu_custom_call.1} parent=47 // pred_check_branch
          %286 = sbr.rel (%p284) target = $region52
        $region51: #{tpu_custom_call.1} parent=47 // pred_region
          %s287 = sand.u32 %s31, 1
          %s288 = scalar_lea.sflag [#allocation4], %s287
          %s289 = sand.u32 %s31, 1
          %s290 = smul.addr %s289, 512
          %s291 = scalar_lea.vmem [#allocation3], %s290
          %s293 = ssub.s32 8192, 8192
          %294 = vsyncadd %s288, %s293
          %s295 = smul.addr %s21, 64
          %s296 = smul.addr %s295, 128
          %s297 = scalar_lea.hbm %s0, %s296
          %s298 = sshll.u32 %s291, 4
          %s299 = int_to_ptr.vmem [resolvable:$true] %s298
          %304 = dma.hbm_to_vmem [thread:$0]  %s297, 8192, %s299, %s288, 256, 256, 16
        $region52: #{tpu_custom_call.1} parent=47 // pred_fallthru
          _
      $region48: #{tpu_custom_call.1} parent=5 // pred_fallthru
        _
      %p305 = scmp.le.s32.totalorder 1, %s21
      %p306 = scmp.lt.s32.totalorder %s21, 3
      %p307 = pnand %p305, %p306
      %p308 = pneg %p307
      // Predicated region
      $region53: #{tpu_custom_call.1} parent=5 // pred_check
        _
      $region54: #{tpu_custom_call.1} parent=5 // pred_check_branch
        %310 = sbr.rel (%p307) target = $region56
      $region55: #{tpu_custom_call.1} parent=5 // pred_region
        %s311 = ssub.s32 %s21, 1
        %s312 = sand.u32 %s34, 1
        %s313 = scalar_lea.sflag [#allocation4], %s312
        %s314 = sand.u32 %s34, 1
        %s315 = smul.addr %s314, 512
        %s316 = scalar_lea.vmem [#allocation3], %s315
        // Predicated region
        $region57: #{tpu_custom_call.1} parent=55 // pred_check
          %p317 = pneg %p47
        $region58: #{tpu_custom_call.1} parent=55 // pred_check_branch
          %319 = sbr.rel (%p317) target = $region60
        $region59: #{tpu_custom_call.1} parent=55 // pred_region
          %320 = dma.done %s313, 8192
        $region60: #{tpu_custom_call.1} parent=55 // pred_fallthru
          _
        %s321 = sand.u32 %s34, 1
        %s322 = scalar_lea.sflag [#allocation4], %s321
        %s323 = sand.u32 %s34, 1
        %s324 = smul.addr %s323, 512
        %s325 = scalar_lea.vmem [#allocation3], %s324
        %p326 = pneg %p47
        %p327 = pneg %p44
        %p328 = pneg %p68
        %p329 = pneg %p65
        %p330 = pneg %p89
        %p331 = pneg %p86
        %p332 = pneg %p110
        %p333 = pneg %p107
        %p334 = pneg %p131
        %p335 = pneg %p128
        %p336 = pneg %p152
        %p337 = pneg %p149
        %p338 = pneg %p173
        %p339 = pneg %p170
        %p340 = pneg %p194
        %p341 = pneg %p191
        %p342 = pneg %p215
        %p343 = pneg %p212
        %p344 = pneg %p241
        %p345 = pneg %p238
        %s346 = sand.u32 %s228, 1
        %s347 = scalar_lea.sflag [#allocation5], %s346
        %s348 = sand.u32 %s228, 1
        %s349 = smul.addr %s348, 512
        %s350 = scalar_lea.vmem [#allocation6], %s349
        %v351 = vld [vmem:[%s316] sm:$0xff]
        %v352 = vld [vmem:[%s316 + $0x8] sm:$0xff]
        %v353 = vld [vmem:[%s316 + $0x10] sm:$0xff]
        %v354 = vld [vmem:[%s316 + $0x18] sm:$0xff]
        %v355 = vld [vmem:[%s316 + $0x20] sm:$0xff]
        %v356 = vld [vmem:[%s316 + $0x28] sm:$0xff]
        %v357 = vld [vmem:[%s316 + $0x30] sm:$0xff]
        %v358 = vld [vmem:[%s316 + $0x38] sm:$0xff]
        %v359 = vld [vmem:[%s316 + $0x40] sm:$0xff]
        %v360 = vld [vmem:[%s316 + $0x48] sm:$0xff]
        %v361 = vld [vmem:[%s316 + $0x50] sm:$0xff]
        %v362 = vld [vmem:[%s316 + $0x58] sm:$0xff]
        %v363 = vld [vmem:[%s316 + $0x60] sm:$0xff]
        %v364 = vld [vmem:[%s316 + $0x68] sm:$0xff]
        %v365 = vld [vmem:[%s316 + $0x70] sm:$0xff]
        %v366 = vld [vmem:[%s316 + $0x78] sm:$0xff]
        %v367 = vld [vmem:[%s316 + $0x80] sm:$0xff]
        %v368 = vld [vmem:[%s316 + $0x88] sm:$0xff]
        %v369 = vld [vmem:[%s316 + $0x90] sm:$0xff]
        %v370 = vld [vmem:[%s316 + $0x98] sm:$0xff]
        %v371 = vld [vmem:[%s316 + $0xa0] sm:$0xff]
        %v372 = vld [vmem:[%s316 + $0xa8] sm:$0xff]
        %v373 = vld [vmem:[%s316 + $0xb0] sm:$0xff]
        %v374 = vld [vmem:[%s316 + $0xb8] sm:$0xff]
        %v375 = vld [vmem:[%s316 + $0xc0] sm:$0xff]
        %v376 = vld [vmem:[%s316 + $0xc8] sm:$0xff]
        %v377 = vld [vmem:[%s316 + $0xd0] sm:$0xff]
        %v378 = vld [vmem:[%s316 + $0xd8] sm:$0xff]
        %v379 = vld [vmem:[%s316 + $0xe0] sm:$0xff]
        %v380 = vld [vmem:[%s316 + $0xe8] sm:$0xff]
        %v381 = vld [vmem:[%s316 + $0xf0] sm:$0xff]
        %v382 = vld [vmem:[%s316 + $0xf8] sm:$0xff]
        %v383 = vld [vmem:[%s316 + $0x100] sm:$0xff]
        %v384 = vld [vmem:[%s316 + $0x108] sm:$0xff]
        %v385 = vld [vmem:[%s316 + $0x110] sm:$0xff]
        %v386 = vld [vmem:[%s316 + $0x118] sm:$0xff]
        %v387 = vld [vmem:[%s316 + $0x120] sm:$0xff]
        %v388 = vld [vmem:[%s316 + $0x128] sm:$0xff]
        %v389 = vld [vmem:[%s316 + $0x130] sm:$0xff]
        %v390 = vld [vmem:[%s316 + $0x138] sm:$0xff]
        %v391 = vld [vmem:[%s316 + $0x140] sm:$0xff]
        %v392 = vld [vmem:[%s316 + $0x148] sm:$0xff]
        %v393 = vld [vmem:[%s316 + $0x150] sm:$0xff]
        %v394 = vld [vmem:[%s316 + $0x158] sm:$0xff]
        %v395 = vld [vmem:[%s316 + $0x160] sm:$0xff]
        %v396 = vld [vmem:[%s316 + $0x168] sm:$0xff]
        %v397 = vld [vmem:[%s316 + $0x170] sm:$0xff]
        %v398 = vld [vmem:[%s316 + $0x178] sm:$0xff]
        %v399 = vld [vmem:[%s316 + $0x180] sm:$0xff]
        %v400 = vld [vmem:[%s316 + $0x188] sm:$0xff]
        %v401 = vld [vmem:[%s316 + $0x190] sm:$0xff]
        %v402 = vld [vmem:[%s316 + $0x198] sm:$0xff]
        %v403 = vld [vmem:[%s316 + $0x1a0] sm:$0xff]
        %v404 = vld [vmem:[%s316 + $0x1a8] sm:$0xff]
        %v405 = vld [vmem:[%s316 + $0x1b0] sm:$0xff]
        %v406 = vld [vmem:[%s316 + $0x1b8] sm:$0xff]
        %v407 = vld [vmem:[%s316 + $0x1c0] sm:$0xff]
        %v408 = vld [vmem:[%s316 + $0x1c8] sm:$0xff]
        %v409 = vld [vmem:[%s316 + $0x1d0] sm:$0xff]
        %v410 = vld [vmem:[%s316 + $0x1d8] sm:$0xff]
        %v411 = vld [vmem:[%s316 + $0x1e0] sm:$0xff]
        %v412 = vld [vmem:[%s316 + $0x1e8] sm:$0xff]
        %v413 = vld [vmem:[%s316 + $0x1f0] sm:$0xff]
        %v414 = vld [vmem:[%s316 + $0x1f8] sm:$0xff]
        %v415 = vld [vmem:[%s1] sm:$0xff]
        %v416 = vld [vmem:[%s1 + $0x8] sm:$0xff]
        %v417 = vld [vmem:[%s1 + $0x10] sm:$0xff]
        %v418 = vld [vmem:[%s1 + $0x18] sm:$0xff]
        %v419 = vld [vmem:[%s1 + $0x20] sm:$0xff]
        %v420 = vld [vmem:[%s1 + $0x28] sm:$0xff]
        %v421 = vld [vmem:[%s1 + $0x30] sm:$0xff]
        %v422 = vld [vmem:[%s1 + $0x38] sm:$0xff]
        %v423 = vld [vmem:[%s1 + $0x40] sm:$0xff]
        %v424 = vld [vmem:[%s1 + $0x48] sm:$0xff]
        %v425 = vld [vmem:[%s1 + $0x50] sm:$0xff]
        %v426 = vld [vmem:[%s1 + $0x58] sm:$0xff]
        %v427 = vld [vmem:[%s1 + $0x60] sm:$0xff]
        %v428 = vld [vmem:[%s1 + $0x68] sm:$0xff]
        %v429 = vld [vmem:[%s1 + $0x70] sm:$0xff]
        %v430 = vld [vmem:[%s1 + $0x78] sm:$0xff]
        %v431 = vld [vmem:[%s1 + $0x80] sm:$0xff]
        %v432 = vld [vmem:[%s1 + $0x88] sm:$0xff]
        %v433 = vld [vmem:[%s1 + $0x90] sm:$0xff]
        %v434 = vld [vmem:[%s1 + $0x98] sm:$0xff]
        %v435 = vld [vmem:[%s1 + $0xa0] sm:$0xff]
        %v436 = vld [vmem:[%s1 + $0xa8] sm:$0xff]
        %v437 = vld [vmem:[%s1 + $0xb0] sm:$0xff]
        %v438 = vld [vmem:[%s1 + $0xb8] sm:$0xff]
        %v439 = vld [vmem:[%s1 + $0xc0] sm:$0xff]
        %v440 = vld [vmem:[%s1 + $0xc8] sm:$0xff]
        %v441 = vld [vmem:[%s1 + $0xd0] sm:$0xff]
        %v442 = vld [vmem:[%s1 + $0xd8] sm:$0xff]
        %v443 = vld [vmem:[%s1 + $0xe0] sm:$0xff]
        %v444 = vld [vmem:[%s1 + $0xe8] sm:$0xff]
        %v445 = vld [vmem:[%s1 + $0xf0] sm:$0xff]
        %v446 = vld [vmem:[%s1 + $0xf8] sm:$0xff]
        %v447 = vld [vmem:[%s2] sm:$0x1]
        %v449 = vlaneseq
        %v450 = vshrl.u32 %v449, 7
        %v451 = vsub.s32 0, %v450
        %v452 = vrot.slane %v447, %v451
        %454 = vmatprep.subr.mxu0 0.0
        %455 = vmatpush1.msra.mxu0 %v430
        %456 = vmatprep.subr.mxu0 0.0
        %457 = vmatpush1.msra.mxu0 %v429
        %458 = vmatprep.subr.mxu0 0.0
        %459 = vmatpush1.msra.mxu0 %v428
        %460 = vmatprep.subr.mxu0 0.0
        %461 = vmatpush1.msra.mxu0 %v427
        %462 = vmatprep.subr.mxu0 0.0
        %463 = vmatpush1.msra.mxu0 %v426
        %464 = vmatprep.subr.mxu0 0.0
        %465 = vmatpush1.msra.mxu0 %v425
        %466 = vmatprep.subr.mxu0 0.0
        %467 = vmatpush1.msra.mxu0 %v424
        %468 = vmatprep.subr.mxu0 0.0
        %469 = vmatpush1.msra.mxu0 %v423
        %470 = vmatprep.subr.mxu0 0.0
        %471 = vmatpush1.msra.mxu0 %v422
        %472 = vmatprep.subr.mxu0 0.0
        %473 = vmatpush1.msra.mxu0 %v421
        %474 = vmatprep.subr.mxu0 0.0
        %475 = vmatpush1.msra.mxu0 %v420
        %476 = vmatprep.subr.mxu0 0.0
        %477 = vmatpush1.msra.mxu0 %v419
        %478 = vmatprep.subr.mxu0 0.0
        %479 = vmatpush1.msra.mxu0 %v418
        %480 = vmatprep.subr.mxu0 0.0
        %481 = vmatpush1.msra.mxu0 %v417
        %482 = vmatprep.subr.mxu0 0.0
        %483 = vmatpush1.msra.mxu0 %v416
        %484 = vmatprep.subr.mxu0 0.0
        %485 = vmatpush1.msra.mxu0 %v415
        %486 = vmatprep.subr.mxu0 0.0
        %487 = vmatpush2.msra.mxu0 %v446
        %488 = vmatprep.subr.mxu0 0.0
        %489 = vmatpush2.msra.mxu0 %v445
        %490 = vmatprep.subr.mxu0 0.0
        %491 = vmatpush2.msra.mxu0 %v444
        %492 = vmatprep.subr.mxu0 0.0
        %493 = vmatpush2.msra.mxu0 %v443
        %494 = vmatprep.subr.mxu0 0.0
        %495 = vmatpush2.msra.mxu0 %v442
        %496 = vmatprep.subr.mxu0 0.0
        %497 = vmatpush2.msra.mxu0 %v441
        %498 = vmatprep.subr.mxu0 0.0
        %499 = vmatpush2.msra.mxu0 %v440
        %500 = vmatprep.subr.mxu0 0.0
        %501 = vmatpush2.msra.mxu0 %v439
        %502 = vmatprep.subr.mxu0 0.0
        %503 = vmatpush2.msra.mxu0 %v438
        %504 = vmatprep.subr.mxu0 0.0
        %505 = vmatpush2.msra.mxu0 %v437
        %506 = vmatprep.subr.mxu0 0.0
        %507 = vmatpush2.msra.mxu0 %v436
        %508 = vmatprep.subr.mxu0 0.0
        %509 = vmatpush2.msra.mxu0 %v435
        %510 = vmatprep.subr.mxu0 0.0
        %511 = vmatpush2.msra.mxu0 %v434
        %512 = vmatprep.subr.mxu0 0.0
        %513 = vmatpush2.msra.mxu0 %v433
        %514 = vmatprep.subr.mxu0 0.0
        %515 = vmatpush2.msra.mxu0 %v432
        %516 = vmatprep.subr.mxu0 0.0
        %517 = vmatpush2.msra.mxu0 %v431
        %518 = vmatprep.mubr.f32.mxu0 %v352
        %519 = vmatmul.mubr.f32.gmra.mxu0 %v351
        %v520 = vpop.f32.mrf.mxu0
        %v521 = vadd.f32 %v452, %v520
        %v522 = vpop.f32.mrf.mxu0
        %523 = vmatprep.mubr.f32.mxu0 %v354
        %524 = vmatmul.mubr.f32.gmra.mxu0 %v353
        %v525 = vpop.f32.mrf.mxu0
        %v526 = vadd.f32 %v452, %v525
        %v527 = vpop.f32.mrf.mxu0
        %528 = vmatprep.mubr.f32.mxu0 %v356
        %529 = vmatmul.mubr.f32.gmra.mxu0 %v355
        %v530 = vpop.f32.mrf.mxu0
        %v531 = vadd.f32 %v452, %v530
        %v532 = vpop.f32.mrf.mxu0
        %533 = vmatprep.mubr.f32.mxu0 %v358
        %534 = vmatmul.mubr.f32.gmra.mxu0 %v357
        %v535 = vpop.f32.mrf.mxu0
        %v536 = vadd.f32 %v452, %v535
        %v537 = vpop.f32.mrf.mxu0
        %538 = vmatprep.mubr.f32.mxu0 %v360
        %539 = vmatmul.mubr.f32.gmra.mxu0 %v359
        %v540 = vpop.f32.mrf.mxu0
        %v541 = vadd.f32 %v452, %v540
        %v542 = vpop.f32.mrf.mxu0
        %543 = vmatprep.mubr.f32.mxu0 %v362
        %544 = vmatmul.mubr.f32.gmra.mxu0 %v361
        %v545 = vpop.f32.mrf.mxu0
        %v546 = vadd.f32 %v452, %v545
        %v547 = vpop.f32.mrf.mxu0
        %548 = vmatprep.mubr.f32.mxu0 %v364
        %549 = vmatmul.mubr.f32.gmra.mxu0 %v363
        %v550 = vpop.f32.mrf.mxu0
        %v551 = vadd.f32 %v452, %v550
        %v552 = vpop.f32.mrf.mxu0
        %553 = vmatprep.mubr.f32.mxu0 %v366
        %554 = vmatmul.mubr.f32.gmra.mxu0 %v365
        %v555 = vpop.f32.mrf.mxu0
        %v556 = vadd.f32 %v452, %v555
        %v557 = vpop.f32.mrf.mxu0
        %558 = vmatprep.mubr.f32.mxu0 %v368
        %559 = vmatmul.mubr.f32.gmra.mxu0 %v367
        %v560 = vpop.f32.mrf.mxu0
        %v561 = vadd.f32 %v452, %v560
        %v562 = vpop.f32.mrf.mxu0
        %563 = vmatprep.mubr.f32.mxu0 %v370
        %564 = vmatmul.mubr.f32.gmra.mxu0 %v369
        %v565 = vpop.f32.mrf.mxu0
        %v566 = vadd.f32 %v452, %v565
        %v567 = vpop.f32.mrf.mxu0
        %568 = vmatprep.mubr.f32.mxu0 %v372
        %569 = vmatmul.mubr.f32.gmra.mxu0 %v371
        %v570 = vpop.f32.mrf.mxu0
        %v571 = vadd.f32 %v452, %v570
        %v572 = vpop.f32.mrf.mxu0
        %573 = vmatprep.mubr.f32.mxu0 %v374
        %574 = vmatmul.mubr.f32.gmra.mxu0 %v373
        %v575 = vpop.f32.mrf.mxu0
        %v576 = vadd.f32 %v452, %v575
        %v577 = vpop.f32.mrf.mxu0
        %578 = vmatprep.mubr.f32.mxu0 %v376
        %579 = vmatmul.mubr.f32.gmra.mxu0 %v375
        %v580 = vpop.f32.mrf.mxu0
        %v581 = vadd.f32 %v452, %v580
        %v582 = vpop.f32.mrf.mxu0
        %583 = vmatprep.mubr.f32.mxu0 %v378
        %584 = vmatmul.mubr.f32.gmra.mxu0 %v377
        %v585 = vpop.f32.mrf.mxu0
        %v586 = vadd.f32 %v452, %v585
        %v587 = vpop.f32.mrf.mxu0
        %588 = vmatprep.mubr.f32.mxu0 %v380
        %589 = vmatmul.mubr.f32.gmra.mxu0 %v379
        %v590 = vpop.f32.mrf.mxu0
        %v591 = vadd.f32 %v452, %v590
        %v592 = vpop.f32.mrf.mxu0
        %593 = vmatprep.mubr.f32.mxu0 %v382
        %594 = vmatmul.mubr.f32.gmra.mxu0 %v381
        %v595 = vpop.f32.mrf.mxu0
        %v596 = vadd.f32 %v452, %v595
        %v597 = vpop.f32.mrf.mxu0
        %598 = vmatprep.mubr.f32.mxu0 %v384
        %599 = vmatmul.mubr.f32.gmra.mxu0 %v383
        %v600 = vpop.f32.mrf.mxu0
        %v601 = vadd.f32 %v452, %v600
        %v602 = vpop.f32.mrf.mxu0
        %603 = vmatprep.mubr.f32.mxu0 %v386
        %604 = vmatmul.mubr.f32.gmra.mxu0 %v385
        %v605 = vpop.f32.mrf.mxu0
        %v606 = vadd.f32 %v452, %v605
        %v607 = vpop.f32.mrf.mxu0
        %608 = vmatprep.mubr.f32.mxu0 %v388
        %609 = vmatmul.mubr.f32.gmra.mxu0 %v387
        %v610 = vpop.f32.mrf.mxu0
        %v611 = vadd.f32 %v452, %v610
        %v612 = vpop.f32.mrf.mxu0
        %613 = vmatprep.mubr.f32.mxu0 %v390
        %614 = vmatmul.mubr.f32.gmra.mxu0 %v389
        %v615 = vpop.f32.mrf.mxu0
        %v616 = vadd.f32 %v452, %v615
        %v617 = vpop.f32.mrf.mxu0
        %618 = vmatprep.mubr.f32.mxu0 %v392
        %619 = vmatmul.mubr.f32.gmra.mxu0 %v391
        %v620 = vpop.f32.mrf.mxu0
        %v621 = vadd.f32 %v452, %v620
        %v622 = vpop.f32.mrf.mxu0
        %623 = vmatprep.mubr.f32.mxu0 %v394
        %624 = vmatmul.mubr.f32.gmra.mxu0 %v393
        %v625 = vpop.f32.mrf.mxu0
        %v626 = vadd.f32 %v452, %v625
        %v627 = vpop.f32.mrf.mxu0
        %628 = vmatprep.mubr.f32.mxu0 %v396
        %629 = vmatmul.mubr.f32.gmra.mxu0 %v395
        %v630 = vpop.f32.mrf.mxu0
        %v631 = vadd.f32 %v452, %v630
        %v632 = vpop.f32.mrf.mxu0
        %633 = vmatprep.mubr.f32.mxu0 %v398
        %634 = vmatmul.mubr.f32.gmra.mxu0 %v397
        %v635 = vpop.f32.mrf.mxu0
        %v636 = vadd.f32 %v452, %v635
        %v637 = vpop.f32.mrf.mxu0
        %638 = vmatprep.mubr.f32.mxu0 %v400
        %639 = vmatmul.mubr.f32.gmra.mxu0 %v399
        %v640 = vpop.f32.mrf.mxu0
        %v641 = vadd.f32 %v452, %v640
        %v642 = vpop.f32.mrf.mxu0
        %643 = vmatprep.mubr.f32.mxu0 %v402
        %644 = vmatmul.mubr.f32.gmra.mxu0 %v401
        %v645 = vpop.f32.mrf.mxu0
        %v646 = vadd.f32 %v452, %v645
        %v647 = vpop.f32.mrf.mxu0
        %648 = vmatprep.mubr.f32.mxu0 %v404
        %649 = vmatmul.mubr.f32.gmra.mxu0 %v403
        %v650 = vpop.f32.mrf.mxu0
        %v651 = vadd.f32 %v452, %v650
        %v652 = vpop.f32.mrf.mxu0
        %653 = vmatprep.mubr.f32.mxu0 %v406
        %654 = vmatmul.mubr.f32.gmra.mxu0 %v405
        %v655 = vpop.f32.mrf.mxu0
        %v656 = vadd.f32 %v452, %v655
        %v657 = vpop.f32.mrf.mxu0
        %658 = vmatprep.mubr.f32.mxu0 %v408
        %659 = vmatmul.mubr.f32.gmra.mxu0 %v407
        %v660 = vpop.f32.mrf.mxu0
        %v661 = vadd.f32 %v452, %v660
        %v662 = vpop.f32.mrf.mxu0
        %663 = vmatprep.mubr.f32.mxu0 %v410
        %664 = vmatmul.mubr.f32.gmra.mxu0 %v409
        %v665 = vpop.f32.mrf.mxu0
        %v666 = vadd.f32 %v452, %v665
        %v667 = vpop.f32.mrf.mxu0
        %668 = vmatprep.mubr.f32.mxu0 %v412
        %669 = vmatmul.mubr.f32.gmra.mxu0 %v411
        %v670 = vpop.f32.mrf.mxu0
        %v671 = vadd.f32 %v452, %v670
        %v672 = vpop.f32.mrf.mxu0
        %673 = vmatprep.mubr.f32.mxu0 %v414
        %674 = vmatmul.mubr.f32.gmra.mxu0 %v413
        %v675 = vpop.f32.mrf.mxu0
        %v676 = vadd.f32 %v452, %v675
        %v677 = vpop.f32.mrf.mxu0
        %678 = vdwg.mxu0
        %v679 = vmax.f32 %v521, 0.0
        %v680 = vmax.f32 %v526, 0.0
        %v681 = vmax.f32 %v531, 0.0
        %v682 = vmax.f32 %v536, 0.0
        %v683 = vmax.f32 %v541, 0.0
        %v684 = vmax.f32 %v546, 0.0
        %v685 = vmax.f32 %v551, 0.0
        %v686 = vmax.f32 %v556, 0.0
        %v687 = vmax.f32 %v561, 0.0
        %v688 = vmax.f32 %v566, 0.0
        %v689 = vmax.f32 %v571, 0.0
        %v690 = vmax.f32 %v576, 0.0
        %v691 = vmax.f32 %v581, 0.0
        %v692 = vmax.f32 %v586, 0.0
        %v693 = vmax.f32 %v591, 0.0
        %v694 = vmax.f32 %v596, 0.0
        %v695 = vmax.f32 %v601, 0.0
        %v696 = vmax.f32 %v606, 0.0
        %v697 = vmax.f32 %v611, 0.0
        %v698 = vmax.f32 %v616, 0.0
        %v699 = vmax.f32 %v621, 0.0
        %v700 = vmax.f32 %v626, 0.0
        %v701 = vmax.f32 %v631, 0.0
        %v702 = vmax.f32 %v636, 0.0
        %v703 = vmax.f32 %v641, 0.0
        %v704 = vmax.f32 %v646, 0.0
        %v705 = vmax.f32 %v651, 0.0
        %v706 = vmax.f32 %v656, 0.0
        %v707 = vmax.f32 %v661, 0.0
        %v708 = vmax.f32 %v666, 0.0
        %v709 = vmax.f32 %v671, 0.0
        %v710 = vmax.f32 %v676, 0.0
        %vm711 = vcmask 523264
        %712 = vst.msk [vmem:[#allocation2] sm:$0xff] %vm711, 0.0
        %713 = vst.msk [vmem:[#allocation2 + $0x8] sm:$0xff] %vm711, 0.0
        %714 = vst.msk [vmem:[#allocation2 + $0x110] sm:$0xff] %vm711, 0.0
        %715 = vst.msk [vmem:[#allocation2 + $0x118] sm:$0xff] %vm711, 0.0
        %716 = vst.msk [vmem:[#allocation2 + $0x10] sm:$0xff] %vm711, %v679
        %717 = vst.msk [vmem:[#allocation2 + $0x18] sm:$0xff] %vm711, %v680
        %718 = vst.msk [vmem:[#allocation2 + $0x20] sm:$0xff] %vm711, %v681
        %719 = vst.msk [vmem:[#allocation2 + $0x28] sm:$0xff] %vm711, %v682
        %720 = vst.msk [vmem:[#allocation2 + $0x30] sm:$0xff] %vm711, %v683
        %721 = vst.msk [vmem:[#allocation2 + $0x38] sm:$0xff] %vm711, %v684
        %722 = vst.msk [vmem:[#allocation2 + $0x40] sm:$0xff] %vm711, %v685
        %723 = vst.msk [vmem:[#allocation2 + $0x48] sm:$0xff] %vm711, %v686
        %724 = vst.msk [vmem:[#allocation2 + $0x50] sm:$0xff] %vm711, %v687
        %725 = vst.msk [vmem:[#allocation2 + $0x58] sm:$0xff] %vm711, %v688
        %726 = vst.msk [vmem:[#allocation2 + $0x60] sm:$0xff] %vm711, %v689
        %727 = vst.msk [vmem:[#allocation2 + $0x68] sm:$0xff] %vm711, %v690
        %728 = vst.msk [vmem:[#allocation2 + $0x70] sm:$0xff] %vm711, %v691
        %729 = vst.msk [vmem:[#allocation2 + $0x78] sm:$0xff] %vm711, %v692
        %730 = vst.msk [vmem:[#allocation2 + $0x80] sm:$0xff] %vm711, %v693
        %731 = vst.msk [vmem:[#allocation2 + $0x88] sm:$0xff] %vm711, %v694
        %732 = vst.msk [vmem:[#allocation2 + $0x90] sm:$0xff] %vm711, %v695
        %733 = vst.msk [vmem:[#allocation2 + $0x98] sm:$0xff] %vm711, %v696
        %734 = vst.msk [vmem:[#allocation2 + $0xa0] sm:$0xff] %vm711, %v697
        %735 = vst.msk [vmem:[#allocation2 + $0xa8] sm:$0xff] %vm711, %v698
        %736 = vst.msk [vmem:[#allocation2 + $0xb0] sm:$0xff] %vm711, %v699
        %737 = vst.msk [vmem:[#allocation2 + $0xb8] sm:$0xff] %vm711, %v700
        %738 = vst.msk [vmem:[#allocation2 + $0xc0] sm:$0xff] %vm711, %v701
        %739 = vst.msk [vmem:[#allocation2 + $0xc8] sm:$0xff] %vm711, %v702
        %740 = vst.msk [vmem:[#allocation2 + $0xd0] sm:$0xff] %vm711, %v703
        %741 = vst.msk [vmem:[#allocation2 + $0xd8] sm:$0xff] %vm711, %v704
        %742 = vst.msk [vmem:[#allocation2 + $0xe0] sm:$0xff] %vm711, %v705
        %743 = vst.msk [vmem:[#allocation2 + $0xe8] sm:$0xff] %vm711, %v706
        %744 = vst.msk [vmem:[#allocation2 + $0xf0] sm:$0xff] %vm711, %v707
        %745 = vst.msk [vmem:[#allocation2 + $0xf8] sm:$0xff] %vm711, %v708
        %746 = vst.msk [vmem:[#allocation2 + $0x100] sm:$0xff] %vm711, %v709
        %747 = vst.msk [vmem:[#allocation2 + $0x108] sm:$0xff] %vm711, %v710
        %v748 = vld [vmem:[#allocation2] sm:$0xff]
        %v749 = vld [vmem:[#allocation2 + $0x8] sm:$0xff]
        %v750 = vld [vmem:[#allocation2 + $0x10] sm:$0xff]
        %v751 = vld [vmem:[#allocation2 + $0x18] sm:$0xff]
        %v752 = vld [vmem:[#allocation2 + $0x20] sm:$0xff]
        %v753 = vld [vmem:[#allocation2 + $0x28] sm:$0xff]
        %v754 = vld [vmem:[#allocation2 + $0x30] sm:$0xff]
        %v755 = vld [vmem:[#allocation2 + $0x38] sm:$0xff]
        %v756 = vld [vmem:[#allocation2 + $0x40] sm:$0xff]
        %v757 = vld [vmem:[#allocation2 + $0x48] sm:$0xff]
        %v758 = vld [vmem:[#allocation2 + $0x50] sm:$0xff]
        %v759 = vld [vmem:[#allocation2 + $0x58] sm:$0xff]
        %v760 = vld [vmem:[#allocation2 + $0x60] sm:$0xff]
        %v761 = vld [vmem:[#allocation2 + $0x68] sm:$0xff]
        %v762 = vld [vmem:[#allocation2 + $0x70] sm:$0xff]
        %v763 = vld [vmem:[#allocation2 + $0x78] sm:$0xff]
        %v764 = vld [vmem:[#allocation2 + $0x80] sm:$0xff]
        %v765 = vld [vmem:[#allocation2 + $0x88] sm:$0xff]
        %v766 = vld [vmem:[#allocation2 + $0x90] sm:$0xff]
        %v767 = vld [vmem:[#allocation2 + $0x98] sm:$0xff]
        %v768 = vld [vmem:[#allocation2 + $0xa0] sm:$0xff]
        %v769 = vld [vmem:[#allocation2 + $0xa8] sm:$0xff]
        %v770 = vld [vmem:[#allocation2 + $0xb0] sm:$0xff]
        %v771 = vld [vmem:[#allocation2 + $0xb8] sm:$0xff]
        %v772 = vld [vmem:[#allocation2 + $0xc0] sm:$0xff]
        %v773 = vld [vmem:[#allocation2 + $0xc8] sm:$0xff]
        %v774 = vld [vmem:[#allocation2 + $0xd0] sm:$0xff]
        %v775 = vld [vmem:[#allocation2 + $0xd8] sm:$0xff]
        %v776 = vld [vmem:[#allocation2 + $0xe0] sm:$0xff]
        %v777 = vld [vmem:[#allocation2 + $0xe8] sm:$0xff]
        %v778 = vld [vmem:[#allocation2 + $0xf0] sm:$0xff]
        %v779 = vld [vmem:[#allocation2 + $0xf8] sm:$0xff]
        %v780 = vld [vmem:[#allocation2 + $0x100] sm:$0xff]
        %v781 = vld [vmem:[#allocation2 + $0x108] sm:$0xff]
        %v782 = vld [vmem:[#allocation2 + $0x110] sm:$0xff]
        %v783 = vld [vmem:[#allocation2 + $0x118] sm:$0xff]
        %816 = vrot.lane.b32.xlu0 %v750, 64
        %v817 = vpop.permute.xlu0 %816
        %818 = vrot.lane.b32.xlu0 %v751, 64
        %v819 = vpop.permute.xlu0 %818
        %820 = vrot.lane.b32.xlu0 %v752, 64
        %v821 = vpop.permute.xlu0 %820
        %822 = vrot.lane.b32.xlu0 %v753, 64
        %v823 = vpop.permute.xlu0 %822
        %824 = vrot.lane.b32.xlu0 %v754, 64
        %v825 = vpop.permute.xlu0 %824
        %826 = vrot.lane.b32.xlu0 %v755, 64
        %v827 = vpop.permute.xlu0 %826
        %828 = vrot.lane.b32.xlu0 %v756, 64
        %v829 = vpop.permute.xlu0 %828
        %830 = vrot.lane.b32.xlu0 %v757, 64
        %v831 = vpop.permute.xlu0 %830
        %832 = vrot.lane.b32.xlu0 %v758, 64
        %v833 = vpop.permute.xlu0 %832
        %834 = vrot.lane.b32.xlu0 %v759, 64
        %v835 = vpop.permute.xlu0 %834
        %836 = vrot.lane.b32.xlu0 %v760, 64
        %v837 = vpop.permute.xlu0 %836
        %838 = vrot.lane.b32.xlu0 %v761, 64
        %v839 = vpop.permute.xlu0 %838
        %840 = vrot.lane.b32.xlu0 %v762, 64
        %v841 = vpop.permute.xlu0 %840
        %842 = vrot.lane.b32.xlu0 %v763, 64
        %v843 = vpop.permute.xlu0 %842
        %844 = vrot.lane.b32.xlu0 %v764, 64
        %v845 = vpop.permute.xlu0 %844
        %846 = vrot.lane.b32.xlu0 %v765, 64
        %v847 = vpop.permute.xlu0 %846
        %848 = vrot.lane.b32.xlu0 %v766, 64
        %v849 = vpop.permute.xlu0 %848
        %850 = vrot.lane.b32.xlu0 %v767, 64
        %v851 = vpop.permute.xlu0 %850
        %852 = vrot.lane.b32.xlu0 %v768, 64
        %v853 = vpop.permute.xlu0 %852
        %854 = vrot.lane.b32.xlu0 %v769, 64
        %v855 = vpop.permute.xlu0 %854
        %856 = vrot.lane.b32.xlu0 %v770, 64
        %v857 = vpop.permute.xlu0 %856
        %858 = vrot.lane.b32.xlu0 %v771, 64
        %v859 = vpop.permute.xlu0 %858
        %860 = vrot.lane.b32.xlu0 %v772, 64
        %v861 = vpop.permute.xlu0 %860
        %862 = vrot.lane.b32.xlu0 %v773, 64
        %v863 = vpop.permute.xlu0 %862
        %864 = vrot.lane.b32.xlu0 %v774, 64
        %v865 = vpop.permute.xlu0 %864
        %866 = vrot.lane.b32.xlu0 %v775, 64
        %v867 = vpop.permute.xlu0 %866
        %868 = vrot.lane.b32.xlu0 %v776, 64
        %v869 = vpop.permute.xlu0 %868
        %870 = vrot.lane.b32.xlu0 %v777, 64
        %v871 = vpop.permute.xlu0 %870
        %872 = vrot.lane.b32.xlu0 %v778, 64
        %v873 = vpop.permute.xlu0 %872
        %874 = vrot.lane.b32.xlu0 %v779, 64
        %v875 = vpop.permute.xlu0 %874
        %876 = vrot.lane.b32.xlu0 %v780, 64
        %v877 = vpop.permute.xlu0 %876
        %878 = vrot.lane.b32.xlu0 %v781, 64
        %v879 = vpop.permute.xlu0 %878
        %v912 = vsel %vm711, %v748, %v817
        %v913 = vsel %vm711, %v749, %v819
        %v914 = vsel %vm711, %v750, %v821
        %v915 = vsel %vm711, %v751, %v823
        %v916 = vsel %vm711, %v752, %v825
        %v917 = vsel %vm711, %v753, %v827
        %v918 = vsel %vm711, %v754, %v829
        %v919 = vsel %vm711, %v755, %v831
        %v920 = vsel %vm711, %v756, %v833
        %v921 = vsel %vm711, %v757, %v835
        %v922 = vsel %vm711, %v758, %v837
        %v923 = vsel %vm711, %v759, %v839
        %v924 = vsel %vm711, %v760, %v841
        %v925 = vsel %vm711, %v761, %v843
        %v926 = vsel %vm711, %v762, %v845
        %v927 = vsel %vm711, %v763, %v847
        %v928 = vsel %vm711, %v764, %v849
        %v929 = vsel %vm711, %v765, %v851
        %v930 = vsel %vm711, %v766, %v853
        %v931 = vsel %vm711, %v767, %v855
        %v932 = vsel %vm711, %v768, %v857
        %v933 = vsel %vm711, %v769, %v859
        %v934 = vsel %vm711, %v770, %v861
        %v935 = vsel %vm711, %v771, %v863
        %v936 = vsel %vm711, %v772, %v865
        %v937 = vsel %vm711, %v773, %v867
        %v938 = vsel %vm711, %v774, %v869
        %v939 = vsel %vm711, %v775, %v871
        %v940 = vsel %vm711, %v776, %v873
        %v941 = vsel %vm711, %v777, %v875
        %v942 = vsel %vm711, %v778, %v877
        %v943 = vsel %vm711, %v779, %v879
        %v944 = vld [vmem:[%s3] sm:$0xff]
        %v945 = vld [vmem:[%s3 + $0x8] sm:$0xff]
        %v946 = vld [vmem:[%s3 + $0x10] sm:$0xff]
        %v947 = vld [vmem:[%s3 + $0x18] sm:$0xff]
        %v948 = vld [vmem:[%s3 + $0x20] sm:$0xff]
        %v949 = vld [vmem:[%s3 + $0x28] sm:$0xff]
        %v950 = vld [vmem:[%s3 + $0x30] sm:$0xff]
        %v951 = vld [vmem:[%s3 + $0x38] sm:$0xff]
        %v952 = vld [vmem:[%s3 + $0x40] sm:$0xff]
        %v953 = vld [vmem:[%s3 + $0x48] sm:$0xff]
        %v954 = vld [vmem:[%s3 + $0x50] sm:$0xff]
        %v955 = vld [vmem:[%s3 + $0x58] sm:$0xff]
        %v956 = vld [vmem:[%s3 + $0x60] sm:$0xff]
        %v957 = vld [vmem:[%s3 + $0x68] sm:$0xff]
        %v958 = vld [vmem:[%s3 + $0x70] sm:$0xff]
        %v959 = vld [vmem:[%s3 + $0x78] sm:$0xff]
        %v960 = vld [vmem:[%s3 + $0x80] sm:$0xff]
        %v961 = vld [vmem:[%s3 + $0x88] sm:$0xff]
        %v962 = vld [vmem:[%s3 + $0x90] sm:$0xff]
        %v963 = vld [vmem:[%s3 + $0x98] sm:$0xff]
        %v964 = vld [vmem:[%s3 + $0xa0] sm:$0xff]
        %v965 = vld [vmem:[%s3 + $0xa8] sm:$0xff]
        %v966 = vld [vmem:[%s3 + $0xb0] sm:$0xff]
        %v967 = vld [vmem:[%s3 + $0xb8] sm:$0xff]
        %v968 = vld [vmem:[%s3 + $0xc0] sm:$0xff]
        %v969 = vld [vmem:[%s3 + $0xc8] sm:$0xff]
        %v970 = vld [vmem:[%s3 + $0xd0] sm:$0xff]
        %v971 = vld [vmem:[%s3 + $0xd8] sm:$0xff]
        %v972 = vld [vmem:[%s3 + $0xe0] sm:$0xff]
        %v973 = vld [vmem:[%s3 + $0xe8] sm:$0xff]
        %v974 = vld [vmem:[%s3 + $0xf0] sm:$0xff]
        %v975 = vld [vmem:[%s3 + $0xf8] sm:$0xff]
        %v976 = vld [vmem:[%s3 + $0x100] sm:$0xff]
        %v977 = vld [vmem:[%s3 + $0x108] sm:$0xff]
        %v978 = vld [vmem:[%s3 + $0x110] sm:$0xff]
        %v979 = vld [vmem:[%s3 + $0x118] sm:$0xff]
        %v980 = vld [vmem:[%s3 + $0x120] sm:$0xff]
        %v981 = vld [vmem:[%s3 + $0x128] sm:$0xff]
        %v982 = vld [vmem:[%s3 + $0x130] sm:$0xff]
        %v983 = vld [vmem:[%s3 + $0x138] sm:$0xff]
        %v984 = vld [vmem:[%s3 + $0x140] sm:$0xff]
        %v985 = vld [vmem:[%s3 + $0x148] sm:$0xff]
        %v986 = vld [vmem:[%s3 + $0x150] sm:$0xff]
        %v987 = vld [vmem:[%s3 + $0x158] sm:$0xff]
        %v988 = vld [vmem:[%s3 + $0x160] sm:$0xff]
        %v989 = vld [vmem:[%s3 + $0x168] sm:$0xff]
        %v990 = vld [vmem:[%s3 + $0x170] sm:$0xff]
        %v991 = vld [vmem:[%s3 + $0x178] sm:$0xff]
        %v992 = vsel %vm711, %v752, 0
        %v994 = vsel %vm711, %v753, 0
        %v996 = vsel %vm711, %v754, 0
        %v998 = vsel %vm711, %v755, 0
        %v1000 = vsel %vm711, %v756, 0
        %v1002 = vsel %vm711, %v757, 0
        %v1004 = vsel %vm711, %v758, 0
        %v1006 = vsel %vm711, %v759, 0
        %v1008 = vsel %vm711, %v760, 0
        %v1010 = vsel %vm711, %v761, 0
        %v1012 = vsel %vm711, %v762, 0
        %v1014 = vsel %vm711, %v763, 0
        %v1016 = vsel %vm711, %v764, 0
        %v1018 = vsel %vm711, %v765, 0
        %v1020 = vsel %vm711, %v766, 0
        %v1022 = vsel %vm711, %v767, 0
        %v1024 = vsel %vm711, %v768, 0
        %v1026 = vsel %vm711, %v769, 0
        %v1028 = vsel %vm711, %v770, 0
        %v1030 = vsel %vm711, %v771, 0
        %v1032 = vsel %vm711, %v772, 0
        %v1034 = vsel %vm711, %v773, 0
        %v1036 = vsel %vm711, %v774, 0
        %v1038 = vsel %vm711, %v775, 0
        %v1040 = vsel %vm711, %v776, 0
        %v1042 = vsel %vm711, %v777, 0
        %v1044 = vsel %vm711, %v778, 0
        %v1046 = vsel %vm711, %v779, 0
        %v1048 = vsel %vm711, %v780, 0
        %v1050 = vsel %vm711, %v781, 0
        %v1053 = vsel %vm711, %v782, 0
        %v1056 = vsel %vm711, %v783, 0
        %1058 = vmatprep.subr.mxu0 %v975
        %1059 = vmatpush1.msra.mxu0 %v974
        %1060 = vmatprep.subr.mxu0 %v973
        %1061 = vmatpush1.msra.mxu0 %v972
        %1062 = vmatprep.subr.mxu0 %v971
        %1063 = vmatpush1.msra.mxu0 %v970
        %1064 = vmatprep.subr.mxu0 %v969
        %1065 = vmatpush1.msra.mxu0 %v968
        %1066 = vmatprep.subr.mxu0 %v967
        %1067 = vmatpush1.msra.mxu0 %v966
        %1068 = vmatprep.subr.mxu0 %v965
        %1069 = vmatpush1.msra.mxu0 %v964
        %1070 = vmatprep.subr.mxu0 %v963
        %1071 = vmatpush1.msra.mxu0 %v962
        %1072 = vmatprep.subr.mxu0 %v961
        %1073 = vmatpush1.msra.mxu0 %v960
        %1074 = vmatprep.subr.mxu0 %v959
        %1075 = vmatpush1.msra.mxu0 %v958
        %1076 = vmatprep.subr.mxu0 %v957
        %1077 = vmatpush1.msra.mxu0 %v956
        %1078 = vmatprep.subr.mxu0 %v955
        %1079 = vmatpush1.msra.mxu0 %v954
        %1080 = vmatprep.subr.mxu0 %v953
        %1081 = vmatpush1.msra.mxu0 %v952
        %1082 = vmatprep.subr.mxu0 %v951
        %1083 = vmatpush1.msra.mxu0 %v950
        %1084 = vmatprep.subr.mxu0 %v949
        %1085 = vmatpush1.msra.mxu0 %v948
        %1086 = vmatprep.subr.mxu0 %v947
        %1087 = vmatpush1.msra.mxu0 %v946
        %1088 = vmatprep.subr.mxu0 %v945
        %1089 = vmatpush1.msra.mxu0 %v944
        %1090 = vmatprep.subr.mxu0 0.0
        %1091 = vmatpush2.msra.mxu0 0.0
        %1092 = vmatprep.subr.mxu0 0.0
        %1093 = vmatpush2.msra.mxu0 0.0
        %1094 = vmatprep.subr.mxu0 0.0
        %1095 = vmatpush2.msra.mxu0 0.0
        %1096 = vmatprep.subr.mxu0 0.0
        %1097 = vmatpush2.msra.mxu0 0.0
        %1098 = vmatprep.subr.mxu0 0.0
        %1099 = vmatpush2.msra.mxu0 0.0
        %1100 = vmatprep.subr.mxu0 0.0
        %1101 = vmatpush2.msra.mxu0 0.0
        %1102 = vmatprep.subr.mxu0 0.0
        %1103 = vmatpush2.msra.mxu0 0.0
        %1104 = vmatprep.subr.mxu0 0.0
        %1105 = vmatpush2.msra.mxu0 0.0
        %1106 = vmatprep.subr.mxu0 %v991
        %1107 = vmatpush2.msra.mxu0 %v990
        %1108 = vmatprep.subr.mxu0 %v989
        %1109 = vmatpush2.msra.mxu0 %v988
        %1110 = vmatprep.subr.mxu0 %v987
        %1111 = vmatpush2.msra.mxu0 %v986
        %1112 = vmatprep.subr.mxu0 %v985
        %1113 = vmatpush2.msra.mxu0 %v984
        %1114 = vmatprep.subr.mxu0 %v983
        %1115 = vmatpush2.msra.mxu0 %v982
        %1116 = vmatprep.subr.mxu0 %v981
        %1117 = vmatpush2.msra.mxu0 %v980
        %1118 = vmatprep.subr.mxu0 %v979
        %1119 = vmatpush2.msra.mxu0 %v978
        %1120 = vmatprep.subr.mxu0 %v977
        %1121 = vmatpush2.msra.mxu0 %v976
        %1122 = vmatprep.mubr.f32.mxu0 %v992
        %1123 = vmatmul.mubr.f32.gmra.mxu0 %v912
        %v1124 = vpop.f32.mrf.mxu0
        %v1125 = vadd.f32 0.0, %v1124
        %v1126 = vpop.f32.mrf.mxu0
        %v1127 = vadd.f32 0.0, %v1126
        %1128 = vmatprep.mubr.f32.mxu0 %v994
        %1129 = vmatmul.mubr.f32.gmra.mxu0 %v913
        %v1130 = vpop.f32.mrf.mxu0
        %v1131 = vadd.f32 0.0, %v1130
        %v1132 = vpop.f32.mrf.mxu0
        %v1133 = vadd.f32 0.0, %v1132
        %1134 = vmatprep.mubr.f32.mxu0 %v996
        %1135 = vmatmul.mubr.f32.gmra.mxu0 %v914
        %v1136 = vpop.f32.mrf.mxu0
        %v1137 = vadd.f32 0.0, %v1136
        %v1138 = vpop.f32.mrf.mxu0
        %v1139 = vadd.f32 0.0, %v1138
        %1140 = vmatprep.mubr.f32.mxu0 %v998
        %1141 = vmatmul.mubr.f32.gmra.mxu0 %v915
        %v1142 = vpop.f32.mrf.mxu0
        %v1143 = vadd.f32 0.0, %v1142
        %v1144 = vpop.f32.mrf.mxu0
        %v1145 = vadd.f32 0.0, %v1144
        %1146 = vmatprep.mubr.f32.mxu0 %v1000
        %1147 = vmatmul.mubr.f32.gmra.mxu0 %v916
        %v1148 = vpop.f32.mrf.mxu0
        %v1149 = vadd.f32 0.0, %v1148
        %v1150 = vpop.f32.mrf.mxu0
        %v1151 = vadd.f32 0.0, %v1150
        %1152 = vmatprep.mubr.f32.mxu0 %v1002
        %1153 = vmatmul.mubr.f32.gmra.mxu0 %v917
        %v1154 = vpop.f32.mrf.mxu0
        %v1155 = vadd.f32 0.0, %v1154
        %v1156 = vpop.f32.mrf.mxu0
        %v1157 = vadd.f32 0.0, %v1156
        %1158 = vmatprep.mubr.f32.mxu0 %v1004
        %1159 = vmatmul.mubr.f32.gmra.mxu0 %v918
        %v1160 = vpop.f32.mrf.mxu0
        %v1161 = vadd.f32 0.0, %v1160
        %v1162 = vpop.f32.mrf.mxu0
        %v1163 = vadd.f32 0.0, %v1162
        %1164 = vmatprep.mubr.f32.mxu0 %v1006
        %1165 = vmatmul.mubr.f32.gmra.mxu0 %v919
        %v1166 = vpop.f32.mrf.mxu0
        %v1167 = vadd.f32 0.0, %v1166
        %v1168 = vpop.f32.mrf.mxu0
        %v1169 = vadd.f32 0.0, %v1168
        %1170 = vmatprep.mubr.f32.mxu0 %v1008
        %1171 = vmatmul.mubr.f32.gmra.mxu0 %v920
        %v1172 = vpop.f32.mrf.mxu0
        %v1173 = vadd.f32 0.0, %v1172
        %v1174 = vpop.f32.mrf.mxu0
        %v1175 = vadd.f32 0.0, %v1174
        %1176 = vmatprep.mubr.f32.mxu0 %v1010
        %1177 = vmatmul.mubr.f32.gmra.mxu0 %v921
        %v1178 = vpop.f32.mrf.mxu0
        %v1179 = vadd.f32 0.0, %v1178
        %v1180 = vpop.f32.mrf.mxu0
        %v1181 = vadd.f32 0.0, %v1180
        %1182 = vmatprep.mubr.f32.mxu0 %v1012
        %1183 = vmatmul.mubr.f32.gmra.mxu0 %v922
        %v1184 = vpop.f32.mrf.mxu0
        %v1185 = vadd.f32 0.0, %v1184
        %v1186 = vpop.f32.mrf.mxu0
        %v1187 = vadd.f32 0.0, %v1186
        %1188 = vmatprep.mubr.f32.mxu0 %v1014
        %1189 = vmatmul.mubr.f32.gmra.mxu0 %v923
        %v1190 = vpop.f32.mrf.mxu0
        %v1191 = vadd.f32 0.0, %v1190
        %v1192 = vpop.f32.mrf.mxu0
        %v1193 = vadd.f32 0.0, %v1192
        %1194 = vmatprep.mubr.f32.mxu0 %v1016
        %1195 = vmatmul.mubr.f32.gmra.mxu0 %v924
        %v1196 = vpop.f32.mrf.mxu0
        %v1197 = vadd.f32 0.0, %v1196
        %v1198 = vpop.f32.mrf.mxu0
        %v1199 = vadd.f32 0.0, %v1198
        %1200 = vmatprep.mubr.f32.mxu0 %v1018
        %1201 = vmatmul.mubr.f32.gmra.mxu0 %v925
        %v1202 = vpop.f32.mrf.mxu0
        %v1203 = vadd.f32 0.0, %v1202
        %v1204 = vpop.f32.mrf.mxu0
        %v1205 = vadd.f32 0.0, %v1204
        %1206 = vmatprep.mubr.f32.mxu0 %v1020
        %1207 = vmatmul.mubr.f32.gmra.mxu0 %v926
        %v1208 = vpop.f32.mrf.mxu0
        %v1209 = vadd.f32 0.0, %v1208
        %v1210 = vpop.f32.mrf.mxu0
        %v1211 = vadd.f32 0.0, %v1210
        %1212 = vmatprep.mubr.f32.mxu0 %v1022
        %1213 = vmatmul.mubr.f32.gmra.mxu0 %v927
        %v1214 = vpop.f32.mrf.mxu0
        %v1215 = vadd.f32 0.0, %v1214
        %v1216 = vpop.f32.mrf.mxu0
        %v1217 = vadd.f32 0.0, %v1216
        %1218 = vmatprep.mubr.f32.mxu0 %v1024
        %1219 = vmatmul.mubr.f32.gmra.mxu0 %v928
        %v1220 = vpop.f32.mrf.mxu0
        %v1221 = vadd.f32 0.0, %v1220
        %v1222 = vpop.f32.mrf.mxu0
        %v1223 = vadd.f32 0.0, %v1222
        %1224 = vmatprep.mubr.f32.mxu0 %v1026
        %1225 = vmatmul.mubr.f32.gmra.mxu0 %v929
        %v1226 = vpop.f32.mrf.mxu0
        %v1227 = vadd.f32 0.0, %v1226
        %v1228 = vpop.f32.mrf.mxu0
        %v1229 = vadd.f32 0.0, %v1228
        %1230 = vmatprep.mubr.f32.mxu0 %v1028
        %1231 = vmatmul.mubr.f32.gmra.mxu0 %v930
        %v1232 = vpop.f32.mrf.mxu0
        %v1233 = vadd.f32 0.0, %v1232
        %v1234 = vpop.f32.mrf.mxu0
        %v1235 = vadd.f32 0.0, %v1234
        %1236 = vmatprep.mubr.f32.mxu0 %v1030
        %1237 = vmatmul.mubr.f32.gmra.mxu0 %v931
        %v1238 = vpop.f32.mrf.mxu0
        %v1239 = vadd.f32 0.0, %v1238
        %v1240 = vpop.f32.mrf.mxu0
        %v1241 = vadd.f32 0.0, %v1240
        %1242 = vmatprep.mubr.f32.mxu0 %v1032
        %1243 = vmatmul.mubr.f32.gmra.mxu0 %v932
        %v1244 = vpop.f32.mrf.mxu0
        %v1245 = vadd.f32 0.0, %v1244
        %v1246 = vpop.f32.mrf.mxu0
        %v1247 = vadd.f32 0.0, %v1246
        %1248 = vmatprep.mubr.f32.mxu0 %v1034
        %1249 = vmatmul.mubr.f32.gmra.mxu0 %v933
        %v1250 = vpop.f32.mrf.mxu0
        %v1251 = vadd.f32 0.0, %v1250
        %v1252 = vpop.f32.mrf.mxu0
        %v1253 = vadd.f32 0.0, %v1252
        %1254 = vmatprep.mubr.f32.mxu0 %v1036
        %1255 = vmatmul.mubr.f32.gmra.mxu0 %v934
        %v1256 = vpop.f32.mrf.mxu0
        %v1257 = vadd.f32 0.0, %v1256
        %v1258 = vpop.f32.mrf.mxu0
        %v1259 = vadd.f32 0.0, %v1258
        %1260 = vmatprep.mubr.f32.mxu0 %v1038
        %1261 = vmatmul.mubr.f32.gmra.mxu0 %v935
        %v1262 = vpop.f32.mrf.mxu0
        %v1263 = vadd.f32 0.0, %v1262
        %v1264 = vpop.f32.mrf.mxu0
        %v1265 = vadd.f32 0.0, %v1264
        %1266 = vmatprep.mubr.f32.mxu0 %v1040
        %1267 = vmatmul.mubr.f32.gmra.mxu0 %v936
        %v1268 = vpop.f32.mrf.mxu0
        %v1269 = vadd.f32 0.0, %v1268
        %v1270 = vpop.f32.mrf.mxu0
        %v1271 = vadd.f32 0.0, %v1270
        %1272 = vmatprep.mubr.f32.mxu0 %v1042
        %1273 = vmatmul.mubr.f32.gmra.mxu0 %v937
        %v1274 = vpop.f32.mrf.mxu0
        %v1275 = vadd.f32 0.0, %v1274
        %v1276 = vpop.f32.mrf.mxu0
        %v1277 = vadd.f32 0.0, %v1276
        %1278 = vmatprep.mubr.f32.mxu0 %v1044
        %1279 = vmatmul.mubr.f32.gmra.mxu0 %v938
        %v1280 = vpop.f32.mrf.mxu0
        %v1281 = vadd.f32 0.0, %v1280
        %v1282 = vpop.f32.mrf.mxu0
        %v1283 = vadd.f32 0.0, %v1282
        %1284 = vmatprep.mubr.f32.mxu0 %v1046
        %1285 = vmatmul.mubr.f32.gmra.mxu0 %v939
        %v1286 = vpop.f32.mrf.mxu0
        %v1287 = vadd.f32 0.0, %v1286
        %v1288 = vpop.f32.mrf.mxu0
        %v1289 = vadd.f32 0.0, %v1288
        %1290 = vmatprep.mubr.f32.mxu0 %v1048
        %1291 = vmatmul.mubr.f32.gmra.mxu0 %v940
        %v1292 = vpop.f32.mrf.mxu0
        %v1293 = vadd.f32 0.0, %v1292
        %v1294 = vpop.f32.mrf.mxu0
        %v1295 = vadd.f32 0.0, %v1294
        %1296 = vmatprep.mubr.f32.mxu0 %v1050
        %1297 = vmatmul.mubr.f32.gmra.mxu0 %v941
        %v1298 = vpop.f32.mrf.mxu0
        %v1299 = vadd.f32 0.0, %v1298
        %v1300 = vpop.f32.mrf.mxu0
        %v1301 = vadd.f32 0.0, %v1300
        %1302 = vmatprep.mubr.f32.mxu0 %v1053
        %1303 = vmatmul.mubr.f32.gmra.mxu0 %v942
        %v1304 = vpop.f32.mrf.mxu0
        %v1305 = vadd.f32 0.0, %v1304
        %v1306 = vpop.f32.mrf.mxu0
        %v1307 = vadd.f32 0.0, %v1306
        %1308 = vmatprep.mubr.f32.mxu0 %v1056
        %1309 = vmatmul.mubr.f32.gmra.mxu0 %v943
        %v1310 = vpop.f32.mrf.mxu0
        %v1311 = vadd.f32 0.0, %v1310
        %v1312 = vpop.f32.mrf.mxu0
        %v1313 = vadd.f32 0.0, %v1312
        %1314 = vdwg.mxu0
        %v1315 = vld [vmem:[%s7] sm:$0xff]
        %v1316 = vld [vmem:[%s7 + $0x8] sm:$0xff]
        %v1317 = vld [vmem:[%s7 + $0x10] sm:$0xff]
        %v1318 = vld [vmem:[%s7 + $0x18] sm:$0xff]
        %v1319 = vld [vmem:[%s7 + $0x20] sm:$0xff]
        %v1320 = vld [vmem:[%s7 + $0x28] sm:$0xff]
        %v1321 = vld [vmem:[%s7 + $0x30] sm:$0xff]
        %v1322 = vld [vmem:[%s7 + $0x38] sm:$0xff]
        %v1323 = vld [vmem:[%s7 + $0x40] sm:$0xff]
        %v1324 = vld [vmem:[%s7 + $0x48] sm:$0xff]
        %v1325 = vld [vmem:[%s7 + $0x50] sm:$0xff]
        %v1326 = vld [vmem:[%s7 + $0x58] sm:$0xff]
        %v1327 = vld [vmem:[%s7 + $0x60] sm:$0xff]
        %v1328 = vld [vmem:[%s7 + $0x68] sm:$0xff]
        %v1329 = vld [vmem:[%s7 + $0x70] sm:$0xff]
        %v1330 = vld [vmem:[%s7 + $0x78] sm:$0xff]
        %v1331 = vld [vmem:[%s7 + $0x80] sm:$0xff]
        %v1332 = vld [vmem:[%s7 + $0x88] sm:$0xff]
        %v1333 = vld [vmem:[%s7 + $0x90] sm:$0xff]
        %v1334 = vld [vmem:[%s7 + $0x98] sm:$0xff]
        %v1335 = vld [vmem:[%s7 + $0xa0] sm:$0xff]
        %v1336 = vld [vmem:[%s7 + $0xa8] sm:$0xff]
        %v1337 = vld [vmem:[%s7 + $0xb0] sm:$0xff]
        %v1338 = vld [vmem:[%s7 + $0xb8] sm:$0xff]
        %v1339 = vld [vmem:[%s7 + $0xc0] sm:$0xff]
        %v1340 = vld [vmem:[%s7 + $0xc8] sm:$0xff]
        %v1341 = vld [vmem:[%s7 + $0xd0] sm:$0xff]
        %v1342 = vld [vmem:[%s7 + $0xd8] sm:$0xff]
        %v1343 = vld [vmem:[%s7 + $0xe0] sm:$0xff]
        %v1344 = vld [vmem:[%s7 + $0xe8] sm:$0xff]
        %v1345 = vld [vmem:[%s7 + $0xf0] sm:$0xff]
        %v1346 = vld [vmem:[%s7 + $0xf8] sm:$0xff]
        %vm1379 = vcmask 1040384
        %v1380 = vrot.slane %v1125, 7
        %v1381 = vrot.slane %v1131, 7
        %v1382 = vsel %vm1379, %v1380, %v1381
        %v1383 = vrot.slane %v1137, 7
        %v1384 = vsel %vm1379, %v1381, %v1383
        %v1385 = vrot.slane %v1143, 7
        %v1386 = vsel %vm1379, %v1383, %v1385
        %v1387 = vrot.slane %v1149, 7
        %v1388 = vsel %vm1379, %v1385, %v1387
        %v1389 = vrot.slane %v1155, 7
        %v1390 = vsel %vm1379, %v1387, %v1389
        %v1391 = vrot.slane %v1161, 7
        %v1392 = vsel %vm1379, %v1389, %v1391
        %v1393 = vrot.slane %v1167, 7
        %v1394 = vsel %vm1379, %v1391, %v1393
        %v1395 = vrot.slane %v1173, 7
        %v1396 = vsel %vm1379, %v1393, %v1395
        %v1397 = vrot.slane %v1179, 7
        %v1398 = vsel %vm1379, %v1395, %v1397
        %v1399 = vrot.slane %v1185, 7
        %v1400 = vsel %vm1379, %v1397, %v1399
        %v1401 = vrot.slane %v1191, 7
        %v1402 = vsel %vm1379, %v1399, %v1401
        %v1403 = vrot.slane %v1197, 7
        %v1404 = vsel %vm1379, %v1401, %v1403
        %v1405 = vrot.slane %v1203, 7
        %v1406 = vsel %vm1379, %v1403, %v1405
        %v1407 = vrot.slane %v1209, 7
        %v1408 = vsel %vm1379, %v1405, %v1407
        %v1409 = vrot.slane %v1215, 7
        %v1410 = vsel %vm1379, %v1407, %v1409
        %v1411 = vrot.slane %v1221, 7
        %v1412 = vsel %vm1379, %v1409, %v1411
        %v1413 = vrot.slane %v1227, 7
        %v1414 = vsel %vm1379, %v1411, %v1413
        %v1415 = vrot.slane %v1233, 7
        %v1416 = vsel %vm1379, %v1413, %v1415
        %v1417 = vrot.slane %v1239, 7
        %v1418 = vsel %vm1379, %v1415, %v1417
        %v1419 = vrot.slane %v1245, 7
        %v1420 = vsel %vm1379, %v1417, %v1419
        %v1421 = vrot.slane %v1251, 7
        %v1422 = vsel %vm1379, %v1419, %v1421
        %v1423 = vrot.slane %v1257, 7
        %v1424 = vsel %vm1379, %v1421, %v1423
        %v1425 = vrot.slane %v1263, 7
        %v1426 = vsel %vm1379, %v1423, %v1425
        %v1427 = vrot.slane %v1269, 7
        %v1428 = vsel %vm1379, %v1425, %v1427
        %v1429 = vrot.slane %v1275, 7
        %v1430 = vsel %vm1379, %v1427, %v1429
        %v1431 = vrot.slane %v1281, 7
        %v1432 = vsel %vm1379, %v1429, %v1431
        %v1433 = vrot.slane %v1287, 7
        %v1434 = vsel %vm1379, %v1431, %v1433
        %v1435 = vrot.slane %v1293, 7
        %v1436 = vsel %vm1379, %v1433, %v1435
        %v1437 = vrot.slane %v1299, 7
        %v1438 = vsel %vm1379, %v1435, %v1437
        %v1439 = vrot.slane %v1305, 7
        %v1440 = vsel %vm1379, %v1437, %v1439
        %v1441 = vrot.slane %v1311, 7
        %v1442 = vsel %vm1379, %v1439, %v1441
        %v1475 = vsel %vm1379, 0.0, %v1380
        %1477 = vset.pattern.permute.xlu0 0
        %1478 = vperm.xlu0 %1477, %v1315
        %v1479 = vpop.permute.xlu0 %1478
        %1482 = vset.pattern.permute.xlu0 0
        %1483 = vperm.xlu0 %1482, %v1316
        %v1484 = vpop.permute.xlu0 %1483
        %1487 = vset.pattern.permute.xlu0 0
        %1488 = vperm.xlu0 %1487, %v1317
        %v1489 = vpop.permute.xlu0 %1488
        %1492 = vset.pattern.permute.xlu0 0
        %1493 = vperm.xlu0 %1492, %v1318
        %v1494 = vpop.permute.xlu0 %1493
        %1497 = vset.pattern.permute.xlu0 0
        %1498 = vperm.xlu0 %1497, %v1319
        %v1499 = vpop.permute.xlu0 %1498
        %1502 = vset.pattern.permute.xlu0 0
        %1503 = vperm.xlu0 %1502, %v1320
        %v1504 = vpop.permute.xlu0 %1503
        %1507 = vset.pattern.permute.xlu0 0
        %1508 = vperm.xlu0 %1507, %v1321
        %v1509 = vpop.permute.xlu0 %1508
        %1512 = vset.pattern.permute.xlu0 0
        %1513 = vperm.xlu0 %1512, %v1322
        %v1514 = vpop.permute.xlu0 %1513
        %1517 = vset.pattern.permute.xlu0 0
        %1518 = vperm.xlu0 %1517, %v1323
        %v1519 = vpop.permute.xlu0 %1518
        %1522 = vset.pattern.permute.xlu0 0
        %1523 = vperm.xlu0 %1522, %v1324
        %v1524 = vpop.permute.xlu0 %1523
        %1527 = vset.pattern.permute.xlu0 0
        %1528 = vperm.xlu0 %1527, %v1325
        %v1529 = vpop.permute.xlu0 %1528
        %1532 = vset.pattern.permute.xlu0 0
        %1533 = vperm.xlu0 %1532, %v1326
        %v1534 = vpop.permute.xlu0 %1533
        %1537 = vset.pattern.permute.xlu0 0
        %1538 = vperm.xlu0 %1537, %v1327
        %v1539 = vpop.permute.xlu0 %1538
        %1542 = vset.pattern.permute.xlu0 0
        %1543 = vperm.xlu0 %1542, %v1328
        %v1544 = vpop.permute.xlu0 %1543
        %1547 = vset.pattern.permute.xlu0 0
        %1548 = vperm.xlu0 %1547, %v1329
        %v1549 = vpop.permute.xlu0 %1548
        %1552 = vset.pattern.permute.xlu0 0
        %1553 = vperm.xlu0 %1552, %v1330
        %v1554 = vpop.permute.xlu0 %1553
        %1557 = vset.pattern.permute.xlu0 0
        %1558 = vperm.xlu0 %1557, %v1331
        %v1559 = vpop.permute.xlu0 %1558
        %1562 = vset.pattern.permute.xlu0 0
        %1563 = vperm.xlu0 %1562, %v1332
        %v1564 = vpop.permute.xlu0 %1563
        %1567 = vset.pattern.permute.xlu0 0
        %1568 = vperm.xlu0 %1567, %v1333
        %v1569 = vpop.permute.xlu0 %1568
        %1572 = vset.pattern.permute.xlu0 0
        %1573 = vperm.xlu0 %1572, %v1334
        %v1574 = vpop.permute.xlu0 %1573
        %1577 = vset.pattern.permute.xlu0 0
        %1578 = vperm.xlu0 %1577, %v1335
        %v1579 = vpop.permute.xlu0 %1578
        %1582 = vset.pattern.permute.xlu0 0
        %1583 = vperm.xlu0 %1582, %v1336
        %v1584 = vpop.permute.xlu0 %1583
        %1587 = vset.pattern.permute.xlu0 0
        %1588 = vperm.xlu0 %1587, %v1337
        %v1589 = vpop.permute.xlu0 %1588
        %1592 = vset.pattern.permute.xlu0 0
        %1593 = vperm.xlu0 %1592, %v1338
        %v1594 = vpop.permute.xlu0 %1593
        %1597 = vset.pattern.permute.xlu0 0
        %1598 = vperm.xlu0 %1597, %v1339
        %v1599 = vpop.permute.xlu0 %1598
        %1602 = vset.pattern.permute.xlu0 0
        %1603 = vperm.xlu0 %1602, %v1340
        %v1604 = vpop.permute.xlu0 %1603
        %1607 = vset.pattern.permute.xlu0 0
        %1608 = vperm.xlu0 %1607, %v1341
        %v1609 = vpop.permute.xlu0 %1608
        %1612 = vset.pattern.permute.xlu0 0
        %1613 = vperm.xlu0 %1612, %v1342
        %v1614 = vpop.permute.xlu0 %1613
        %1617 = vset.pattern.permute.xlu0 0
        %1618 = vperm.xlu0 %1617, %v1343
        %v1619 = vpop.permute.xlu0 %1618
        %1622 = vset.pattern.permute.xlu0 0
        %1623 = vperm.xlu0 %1622, %v1344
        %v1624 = vpop.permute.xlu0 %1623
        %1627 = vset.pattern.permute.xlu0 0
        %1628 = vperm.xlu0 %1627, %v1345
        %v1629 = vpop.permute.xlu0 %1628
        %1632 = vset.pattern.permute.xlu0 0
        %1633 = vperm.xlu0 %1632, %v1346
        %v1634 = vpop.permute.xlu0 %1633
        %v1636 = vmul.f32 %v1479, %v1475
        %v1637 = vmul.f32 %v1484, %v1382
        %v1638 = vmul.f32 %v1489, %v1384
        %v1639 = vmul.f32 %v1494, %v1386
        %v1640 = vmul.f32 %v1499, %v1388
        %v1641 = vmul.f32 %v1504, %v1390
        %v1642 = vmul.f32 %v1509, %v1392
        %v1643 = vmul.f32 %v1514, %v1394
        %v1644 = vmul.f32 %v1519, %v1396
        %v1645 = vmul.f32 %v1524, %v1398
        %v1646 = vmul.f32 %v1529, %v1400
        %v1647 = vmul.f32 %v1534, %v1402
        %v1648 = vmul.f32 %v1539, %v1404
        %v1649 = vmul.f32 %v1544, %v1406
        %v1650 = vmul.f32 %v1549, %v1408
        %v1651 = vmul.f32 %v1554, %v1410
        %v1652 = vmul.f32 %v1559, %v1412
        %v1653 = vmul.f32 %v1564, %v1414
        %v1654 = vmul.f32 %v1569, %v1416
        %v1655 = vmul.f32 %v1574, %v1418
        %v1656 = vmul.f32 %v1579, %v1420
        %v1657 = vmul.f32 %v1584, %v1422
        %v1658 = vmul.f32 %v1589, %v1424
        %v1659 = vmul.f32 %v1594, %v1426
        %v1660 = vmul.f32 %v1599, %v1428
        %v1661 = vmul.f32 %v1604, %v1430
        %v1662 = vmul.f32 %v1609, %v1432
        %v1663 = vmul.f32 %v1614, %v1434
        %v1664 = vmul.f32 %v1619, %v1436
        %v1665 = vmul.f32 %v1624, %v1438
        %v1666 = vmul.f32 %v1629, %v1440
        %v1667 = vmul.f32 %v1634, %v1442
        %v1668 = vld [vmem:[%s8] sm:$0xff]
        %v1669 = vld [vmem:[%s8 + $0x8] sm:$0xff]
        %v1670 = vld [vmem:[%s8 + $0x10] sm:$0xff]
        %v1671 = vld [vmem:[%s8 + $0x18] sm:$0xff]
        %v1672 = vld [vmem:[%s8 + $0x20] sm:$0xff]
        %v1673 = vld [vmem:[%s8 + $0x28] sm:$0xff]
        %v1674 = vld [vmem:[%s8 + $0x30] sm:$0xff]
        %v1675 = vld [vmem:[%s8 + $0x38] sm:$0xff]
        %v1676 = vld [vmem:[%s8 + $0x40] sm:$0xff]
        %v1677 = vld [vmem:[%s8 + $0x48] sm:$0xff]
        %v1678 = vld [vmem:[%s8 + $0x50] sm:$0xff]
        %v1679 = vld [vmem:[%s8 + $0x58] sm:$0xff]
        %v1680 = vld [vmem:[%s8 + $0x60] sm:$0xff]
        %v1681 = vld [vmem:[%s8 + $0x68] sm:$0xff]
        %v1682 = vld [vmem:[%s8 + $0x70] sm:$0xff]
        %v1683 = vld [vmem:[%s8 + $0x78] sm:$0xff]
        %v1684 = vld [vmem:[%s8 + $0x80] sm:$0xff]
        %v1685 = vld [vmem:[%s8 + $0x88] sm:$0xff]
        %v1686 = vld [vmem:[%s8 + $0x90] sm:$0xff]
        %v1687 = vld [vmem:[%s8 + $0x98] sm:$0xff]
        %v1688 = vld [vmem:[%s8 + $0xa0] sm:$0xff]
        %v1689 = vld [vmem:[%s8 + $0xa8] sm:$0xff]
        %v1690 = vld [vmem:[%s8 + $0xb0] sm:$0xff]
        %v1691 = vld [vmem:[%s8 + $0xb8] sm:$0xff]
        %v1692 = vld [vmem:[%s8 + $0xc0] sm:$0xff]
        %v1693 = vld [vmem:[%s8 + $0xc8] sm:$0xff]
        %v1694 = vld [vmem:[%s8 + $0xd0] sm:$0xff]
        %v1695 = vld [vmem:[%s8 + $0xd8] sm:$0xff]
        %v1696 = vld [vmem:[%s8 + $0xe0] sm:$0xff]
        %v1697 = vld [vmem:[%s8 + $0xe8] sm:$0xff]
        %v1698 = vld [vmem:[%s8 + $0xf0] sm:$0xff]
        %v1699 = vld [vmem:[%s8 + $0xf8] sm:$0xff]
        %vm1732 = vcmask 1046528
        %v1733 = vrot.slane %v1127, 1
        %v1734 = vrot.slane %v1133, 1
        %v1735 = vsel %vm1732, %v1733, %v1734
        %v1736 = vrot.slane %v1139, 1
        %v1737 = vsel %vm1732, %v1734, %v1736
        %v1738 = vrot.slane %v1145, 1
        %v1739 = vsel %vm1732, %v1736, %v1738
        %v1740 = vrot.slane %v1151, 1
        %v1741 = vsel %vm1732, %v1738, %v1740
        %v1742 = vrot.slane %v1157, 1
        %v1743 = vsel %vm1732, %v1740, %v1742
        %v1744 = vrot.slane %v1163, 1
        %v1745 = vsel %vm1732, %v1742, %v1744
        %v1746 = vrot.slane %v1169, 1
        %v1747 = vsel %vm1732, %v1744, %v1746
        %v1748 = vrot.slane %v1175, 1
        %v1749 = vsel %vm1732, %v1746, %v1748
        %v1750 = vrot.slane %v1181, 1
        %v1751 = vsel %vm1732, %v1748, %v1750
        %v1752 = vrot.slane %v1187, 1
        %v1753 = vsel %vm1732, %v1750, %v1752
        %v1754 = vrot.slane %v1193, 1
        %v1755 = vsel %vm1732, %v1752, %v1754
        %v1756 = vrot.slane %v1199, 1
        %v1757 = vsel %vm1732, %v1754, %v1756
        %v1758 = vrot.slane %v1205, 1
        %v1759 = vsel %vm1732, %v1756, %v1758
        %v1760 = vrot.slane %v1211, 1
        %v1761 = vsel %vm1732, %v1758, %v1760
        %v1762 = vrot.slane %v1217, 1
        %v1763 = vsel %vm1732, %v1760, %v1762
        %v1764 = vrot.slane %v1223, 1
        %v1765 = vsel %vm1732, %v1762, %v1764
        %v1766 = vrot.slane %v1229, 1
        %v1767 = vsel %vm1732, %v1764, %v1766
        %v1768 = vrot.slane %v1235, 1
        %v1769 = vsel %vm1732, %v1766, %v1768
        %v1770 = vrot.slane %v1241, 1
        %v1771 = vsel %vm1732, %v1768, %v1770
        %v1772 = vrot.slane %v1247, 1
        %v1773 = vsel %vm1732, %v1770, %v1772
        %v1774 = vrot.slane %v1253, 1
        %v1775 = vsel %vm1732, %v1772, %v1774
        %v1776 = vrot.slane %v1259, 1
        %v1777 = vsel %vm1732, %v1774, %v1776
        %v1778 = vrot.slane %v1265, 1
        %v1779 = vsel %vm1732, %v1776, %v1778
        %v1780 = vrot.slane %v1271, 1
        %v1781 = vsel %vm1732, %v1778, %v1780
        %v1782 = vrot.slane %v1277, 1
        %v1783 = vsel %vm1732, %v1780, %v1782
        %v1784 = vrot.slane %v1283, 1
        %v1785 = vsel %vm1732, %v1782, %v1784
        %v1786 = vrot.slane %v1289, 1
        %v1787 = vsel %vm1732, %v1784, %v1786
        %v1788 = vrot.slane %v1295, 1
        %v1789 = vsel %vm1732, %v1786, %v1788
        %v1790 = vrot.slane %v1301, 1
        %v1791 = vsel %vm1732, %v1788, %v1790
        %v1792 = vrot.slane %v1307, 1
        %v1793 = vsel %vm1732, %v1790, %v1792
        %v1794 = vrot.slane %v1313, 1
        %v1795 = vsel %vm1732, %v1792, %v1794
        %v1828 = vsel %vm1732, %v1794, 0.0
        %1830 = vset.pattern.permute.xlu0 0
        %1831 = vperm.xlu0 %1830, %v1668
        %v1832 = vpop.permute.xlu0 %1831
        %1835 = vset.pattern.permute.xlu0 0
        %1836 = vperm.xlu0 %1835, %v1669
        %v1837 = vpop.permute.xlu0 %1836
        %1840 = vset.pattern.permute.xlu0 0
        %1841 = vperm.xlu0 %1840, %v1670
        %v1842 = vpop.permute.xlu0 %1841
        %1845 = vset.pattern.permute.xlu0 0
        %1846 = vperm.xlu0 %1845, %v1671
        %v1847 = vpop.permute.xlu0 %1846
        %1850 = vset.pattern.permute.xlu0 0
        %1851 = vperm.xlu0 %1850, %v1672
        %v1852 = vpop.permute.xlu0 %1851
        %1855 = vset.pattern.permute.xlu0 0
        %1856 = vperm.xlu0 %1855, %v1673
        %v1857 = vpop.permute.xlu0 %1856
        %1860 = vset.pattern.permute.xlu0 0
        %1861 = vperm.xlu0 %1860, %v1674
        %v1862 = vpop.permute.xlu0 %1861
        %1865 = vset.pattern.permute.xlu0 0
        %1866 = vperm.xlu0 %1865, %v1675
        %v1867 = vpop.permute.xlu0 %1866
        %1870 = vset.pattern.permute.xlu0 0
        %1871 = vperm.xlu0 %1870, %v1676
        %v1872 = vpop.permute.xlu0 %1871
        %1875 = vset.pattern.permute.xlu0 0
        %1876 = vperm.xlu0 %1875, %v1677
        %v1877 = vpop.permute.xlu0 %1876
        %1880 = vset.pattern.permute.xlu0 0
        %1881 = vperm.xlu0 %1880, %v1678
        %v1882 = vpop.permute.xlu0 %1881
        %1885 = vset.pattern.permute.xlu0 0
        %1886 = vperm.xlu0 %1885, %v1679
        %v1887 = vpop.permute.xlu0 %1886
        %1890 = vset.pattern.permute.xlu0 0
        %1891 = vperm.xlu0 %1890, %v1680
        %v1892 = vpop.permute.xlu0 %1891
        %1895 = vset.pattern.permute.xlu0 0
        %1896 = vperm.xlu0 %1895, %v1681
        %v1897 = vpop.permute.xlu0 %1896
        %1900 = vset.pattern.permute.xlu0 0
        %1901 = vperm.xlu0 %1900, %v1682
        %v1902 = vpop.permute.xlu0 %1901
        %1905 = vset.pattern.permute.xlu0 0
        %1906 = vperm.xlu0 %1905, %v1683
        %v1907 = vpop.permute.xlu0 %1906
        %1910 = vset.pattern.permute.xlu0 0
        %1911 = vperm.xlu0 %1910, %v1684
        %v1912 = vpop.permute.xlu0 %1911
        %1915 = vset.pattern.permute.xlu0 0
        %1916 = vperm.xlu0 %1915, %v1685
        %v1917 = vpop.permute.xlu0 %1916
        %1920 = vset.pattern.permute.xlu0 0
        %1921 = vperm.xlu0 %1920, %v1686
        %v1922 = vpop.permute.xlu0 %1921
        %1925 = vset.pattern.permute.xlu0 0
        %1926 = vperm.xlu0 %1925, %v1687
        %v1927 = vpop.permute.xlu0 %1926
        %1930 = vset.pattern.permute.xlu0 0
        %1931 = vperm.xlu0 %1930, %v1688
        %v1932 = vpop.permute.xlu0 %1931
        %1935 = vset.pattern.permute.xlu0 0
        %1936 = vperm.xlu0 %1935, %v1689
        %v1937 = vpop.permute.xlu0 %1936
        %1940 = vset.pattern.permute.xlu0 0
        %1941 = vperm.xlu0 %1940, %v1690
        %v1942 = vpop.permute.xlu0 %1941
        %1945 = vset.pattern.permute.xlu0 0
        %1946 = vperm.xlu0 %1945, %v1691
        %v1947 = vpop.permute.xlu0 %1946
        %1950 = vset.pattern.permute.xlu0 0
        %1951 = vperm.xlu0 %1950, %v1692
        %v1952 = vpop.permute.xlu0 %1951
        %1955 = vset.pattern.permute.xlu0 0
        %1956 = vperm.xlu0 %1955, %v1693
        %v1957 = vpop.permute.xlu0 %1956
        %1960 = vset.pattern.permute.xlu0 0
        %1961 = vperm.xlu0 %1960, %v1694
        %v1962 = vpop.permute.xlu0 %1961
        %1965 = vset.pattern.permute.xlu0 0
        %1966 = vperm.xlu0 %1965, %v1695
        %v1967 = vpop.permute.xlu0 %1966
        %1970 = vset.pattern.permute.xlu0 0
        %1971 = vperm.xlu0 %1970, %v1696
        %v1972 = vpop.permute.xlu0 %1971
        %1975 = vset.pattern.permute.xlu0 0
        %1976 = vperm.xlu0 %1975, %v1697
        %v1977 = vpop.permute.xlu0 %1976
        %1980 = vset.pattern.permute.xlu0 0
        %1981 = vperm.xlu0 %1980, %v1698
        %v1982 = vpop.permute.xlu0 %1981
        %1985 = vset.pattern.permute.xlu0 0
        %1986 = vperm.xlu0 %1985, %v1699
        %v1987 = vpop.permute.xlu0 %1986
        %v1989 = vmul.f32 %v1832, %v1735
        %v1990 = vmul.f32 %v1837, %v1737
        %v1991 = vmul.f32 %v1842, %v1739
        %v1992 = vmul.f32 %v1847, %v1741
        %v1993 = vmul.f32 %v1852, %v1743
        %v1994 = vmul.f32 %v1857, %v1745
        %v1995 = vmul.f32 %v1862, %v1747
        %v1996 = vmul.f32 %v1867, %v1749
        %v1997 = vmul.f32 %v1872, %v1751
        %v1998 = vmul.f32 %v1877, %v1753
        %v1999 = vmul.f32 %v1882, %v1755
        %v2000 = vmul.f32 %v1887, %v1757
        %v2001 = vmul.f32 %v1892, %v1759
        %v2002 = vmul.f32 %v1897, %v1761
        %v2003 = vmul.f32 %v1902, %v1763
        %v2004 = vmul.f32 %v1907, %v1765
        %v2005 = vmul.f32 %v1912, %v1767
        %v2006 = vmul.f32 %v1917, %v1769
        %v2007 = vmul.f32 %v1922, %v1771
        %v2008 = vmul.f32 %v1927, %v1773
        %v2009 = vmul.f32 %v1932, %v1775
        %v2010 = vmul.f32 %v1937, %v1777
        %v2011 = vmul.f32 %v1942, %v1779
        %v2012 = vmul.f32 %v1947, %v1781
        %v2013 = vmul.f32 %v1952, %v1783
        %v2014 = vmul.f32 %v1957, %v1785
        %v2015 = vmul.f32 %v1962, %v1787
        %v2016 = vmul.f32 %v1967, %v1789
        %v2017 = vmul.f32 %v1972, %v1791
        %v2018 = vmul.f32 %v1977, %v1793
        %v2019 = vmul.f32 %v1982, %v1795
        %v2020 = vmul.f32 %v1987, %v1828
        %2021 = vrot.lane.b32.xlu0 %v1125, 64
        %v2022 = vpop.permute.xlu0 %2021
        %2023 = vrot.lane.b32.xlu0 %v1131, 64
        %v2024 = vpop.permute.xlu0 %2023
        %2025 = vrot.lane.b32.xlu0 %v1137, 64
        %v2026 = vpop.permute.xlu0 %2025
        %2027 = vrot.lane.b32.xlu0 %v1143, 64
        %v2028 = vpop.permute.xlu0 %2027
        %2029 = vrot.lane.b32.xlu0 %v1149, 64
        %v2030 = vpop.permute.xlu0 %2029
        %2031 = vrot.lane.b32.xlu0 %v1155, 64
        %v2032 = vpop.permute.xlu0 %2031
        %2033 = vrot.lane.b32.xlu0 %v1161, 64
        %v2034 = vpop.permute.xlu0 %2033
        %2035 = vrot.lane.b32.xlu0 %v1167, 64
        %v2036 = vpop.permute.xlu0 %2035
        %2037 = vrot.lane.b32.xlu0 %v1173, 64
        %v2038 = vpop.permute.xlu0 %2037
        %2039 = vrot.lane.b32.xlu0 %v1179, 64
        %v2040 = vpop.permute.xlu0 %2039
        %2041 = vrot.lane.b32.xlu0 %v1185, 64
        %v2042 = vpop.permute.xlu0 %2041
        %2043 = vrot.lane.b32.xlu0 %v1191, 64
        %v2044 = vpop.permute.xlu0 %2043
        %2045 = vrot.lane.b32.xlu0 %v1197, 64
        %v2046 = vpop.permute.xlu0 %2045
        %2047 = vrot.lane.b32.xlu0 %v1203, 64
        %v2048 = vpop.permute.xlu0 %2047
        %2049 = vrot.lane.b32.xlu0 %v1209, 64
        %v2050 = vpop.permute.xlu0 %2049
        %2051 = vrot.lane.b32.xlu0 %v1215, 64
        %v2052 = vpop.permute.xlu0 %2051
        %2053 = vrot.lane.b32.xlu0 %v1221, 64
        %v2054 = vpop.permute.xlu0 %2053
        %2055 = vrot.lane.b32.xlu0 %v1227, 64
        %v2056 = vpop.permute.xlu0 %2055
        %2057 = vrot.lane.b32.xlu0 %v1233, 64
        %v2058 = vpop.permute.xlu0 %2057
        %2059 = vrot.lane.b32.xlu0 %v1239, 64
        %v2060 = vpop.permute.xlu0 %2059
        %2061 = vrot.lane.b32.xlu0 %v1245, 64
        %v2062 = vpop.permute.xlu0 %2061
        %2063 = vrot.lane.b32.xlu0 %v1251, 64
        %v2064 = vpop.permute.xlu0 %2063
        %2065 = vrot.lane.b32.xlu0 %v1257, 64
        %v2066 = vpop.permute.xlu0 %2065
        %2067 = vrot.lane.b32.xlu0 %v1263, 64
        %v2068 = vpop.permute.xlu0 %2067
        %2069 = vrot.lane.b32.xlu0 %v1269, 64
        %v2070 = vpop.permute.xlu0 %2069
        %2071 = vrot.lane.b32.xlu0 %v1275, 64
        %v2072 = vpop.permute.xlu0 %2071
        %2073 = vrot.lane.b32.xlu0 %v1281, 64
        %v2074 = vpop.permute.xlu0 %2073
        %2075 = vrot.lane.b32.xlu0 %v1287, 64
        %v2076 = vpop.permute.xlu0 %2075
        %2077 = vrot.lane.b32.xlu0 %v1293, 64
        %v2078 = vpop.permute.xlu0 %2077
        %2079 = vrot.lane.b32.xlu0 %v1299, 64
        %v2080 = vpop.permute.xlu0 %2079
        %2081 = vrot.lane.b32.xlu0 %v1305, 64
        %v2082 = vpop.permute.xlu0 %2081
        %2083 = vrot.lane.b32.xlu0 %v1311, 64
        %v2084 = vpop.permute.xlu0 %2083
        %v2117 = vadd.f32 %v1636, %v2022
        %v2118 = vadd.f32 %v1637, %v2024
        %v2119 = vadd.f32 %v1638, %v2026
        %v2120 = vadd.f32 %v1639, %v2028
        %v2121 = vadd.f32 %v1640, %v2030
        %v2122 = vadd.f32 %v1641, %v2032
        %v2123 = vadd.f32 %v1642, %v2034
        %v2124 = vadd.f32 %v1643, %v2036
        %v2125 = vadd.f32 %v1644, %v2038
        %v2126 = vadd.f32 %v1645, %v2040
        %v2127 = vadd.f32 %v1646, %v2042
        %v2128 = vadd.f32 %v1647, %v2044
        %v2129 = vadd.f32 %v1648, %v2046
        %v2130 = vadd.f32 %v1649, %v2048
        %v2131 = vadd.f32 %v1650, %v2050
        %v2132 = vadd.f32 %v1651, %v2052
        %v2133 = vadd.f32 %v1652, %v2054
        %v2134 = vadd.f32 %v1653, %v2056
        %v2135 = vadd.f32 %v1654, %v2058
        %v2136 = vadd.f32 %v1655, %v2060
        %v2137 = vadd.f32 %v1656, %v2062
        %v2138 = vadd.f32 %v1657, %v2064
        %v2139 = vadd.f32 %v1658, %v2066
        %v2140 = vadd.f32 %v1659, %v2068
        %v2141 = vadd.f32 %v1660, %v2070
        %v2142 = vadd.f32 %v1661, %v2072
        %v2143 = vadd.f32 %v1662, %v2074
        %v2144 = vadd.f32 %v1663, %v2076
        %v2145 = vadd.f32 %v1664, %v2078
        %v2146 = vadd.f32 %v1665, %v2080
        %v2147 = vadd.f32 %v1666, %v2082
        %v2148 = vadd.f32 %v1667, %v2084
        %v2149 = vadd.f32 %v2117, %v1989
        %v2150 = vadd.f32 %v2118, %v1990
        %v2151 = vadd.f32 %v2119, %v1991
        %v2152 = vadd.f32 %v2120, %v1992
        %v2153 = vadd.f32 %v2121, %v1993
        %v2154 = vadd.f32 %v2122, %v1994
        %v2155 = vadd.f32 %v2123, %v1995
        %v2156 = vadd.f32 %v2124, %v1996
        %v2157 = vadd.f32 %v2125, %v1997
        %v2158 = vadd.f32 %v2126, %v1998
        %v2159 = vadd.f32 %v2127, %v1999
        %v2160 = vadd.f32 %v2128, %v2000
        %v2161 = vadd.f32 %v2129, %v2001
        %v2162 = vadd.f32 %v2130, %v2002
        %v2163 = vadd.f32 %v2131, %v2003
        %v2164 = vadd.f32 %v2132, %v2004
        %v2165 = vadd.f32 %v2133, %v2005
        %v2166 = vadd.f32 %v2134, %v2006
        %v2167 = vadd.f32 %v2135, %v2007
        %v2168 = vadd.f32 %v2136, %v2008
        %v2169 = vadd.f32 %v2137, %v2009
        %v2170 = vadd.f32 %v2138, %v2010
        %v2171 = vadd.f32 %v2139, %v2011
        %v2172 = vadd.f32 %v2140, %v2012
        %v2173 = vadd.f32 %v2141, %v2013
        %v2174 = vadd.f32 %v2142, %v2014
        %v2175 = vadd.f32 %v2143, %v2015
        %v2176 = vadd.f32 %v2144, %v2016
        %v2177 = vadd.f32 %v2145, %v2017
        %v2178 = vadd.f32 %v2146, %v2018
        %v2179 = vadd.f32 %v2147, %v2019
        %v2180 = vadd.f32 %v2148, %v2020
        %v2181 = vld [vmem:[%s4] sm:$0x1]
        %v2183 = vlaneseq
        %v2184 = vshrl.u32 %v2183, 7
        %v2185 = vsub.s32 0, %v2184
        %v2186 = vrot.slane %v2181, %v2185
        %v2188 = vadd.f32 %v2149, %v2186
        %v2189 = vadd.f32 %v2150, %v2186
        %v2190 = vadd.f32 %v2151, %v2186
        %v2191 = vadd.f32 %v2152, %v2186
        %v2192 = vadd.f32 %v2153, %v2186
        %v2193 = vadd.f32 %v2154, %v2186
        %v2194 = vadd.f32 %v2155, %v2186
        %v2195 = vadd.f32 %v2156, %v2186
        %v2196 = vadd.f32 %v2157, %v2186
        %v2197 = vadd.f32 %v2158, %v2186
        %v2198 = vadd.f32 %v2159, %v2186
        %v2199 = vadd.f32 %v2160, %v2186
        %v2200 = vadd.f32 %v2161, %v2186
        %v2201 = vadd.f32 %v2162, %v2186
        %v2202 = vadd.f32 %v2163, %v2186
        %v2203 = vadd.f32 %v2164, %v2186
        %v2204 = vadd.f32 %v2165, %v2186
        %v2205 = vadd.f32 %v2166, %v2186
        %v2206 = vadd.f32 %v2167, %v2186
        %v2207 = vadd.f32 %v2168, %v2186
        %v2208 = vadd.f32 %v2169, %v2186
        %v2209 = vadd.f32 %v2170, %v2186
        %v2210 = vadd.f32 %v2171, %v2186
        %v2211 = vadd.f32 %v2172, %v2186
        %v2212 = vadd.f32 %v2173, %v2186
        %v2213 = vadd.f32 %v2174, %v2186
        %v2214 = vadd.f32 %v2175, %v2186
        %v2215 = vadd.f32 %v2176, %v2186
        %v2216 = vadd.f32 %v2177, %v2186
        %v2217 = vadd.f32 %v2178, %v2186
        %v2218 = vadd.f32 %v2179, %v2186
        %v2219 = vadd.f32 %v2180, %v2186
        %v2220 = vmax.f32 %v2188, 0.0
        %v2221 = vmax.f32 %v2189, 0.0
        %v2222 = vmax.f32 %v2190, 0.0
        %v2223 = vmax.f32 %v2191, 0.0
        %v2224 = vmax.f32 %v2192, 0.0
        %v2225 = vmax.f32 %v2193, 0.0
        %v2226 = vmax.f32 %v2194, 0.0
        %v2227 = vmax.f32 %v2195, 0.0
        %v2228 = vmax.f32 %v2196, 0.0
        %v2229 = vmax.f32 %v2197, 0.0
        %v2230 = vmax.f32 %v2198, 0.0
        %v2231 = vmax.f32 %v2199, 0.0
        %v2232 = vmax.f32 %v2200, 0.0
        %v2233 = vmax.f32 %v2201, 0.0
        %v2234 = vmax.f32 %v2202, 0.0
        %v2235 = vmax.f32 %v2203, 0.0
        %v2236 = vmax.f32 %v2204, 0.0
        %v2237 = vmax.f32 %v2205, 0.0
        %v2238 = vmax.f32 %v2206, 0.0
        %v2239 = vmax.f32 %v2207, 0.0
        %v2240 = vmax.f32 %v2208, 0.0
        %v2241 = vmax.f32 %v2209, 0.0
        %v2242 = vmax.f32 %v2210, 0.0
        %v2243 = vmax.f32 %v2211, 0.0
        %v2244 = vmax.f32 %v2212, 0.0
        %v2245 = vmax.f32 %v2213, 0.0
        %v2246 = vmax.f32 %v2214, 0.0
        %v2247 = vmax.f32 %v2215, 0.0
        %v2248 = vmax.f32 %v2216, 0.0
        %v2249 = vmax.f32 %v2217, 0.0
        %v2250 = vmax.f32 %v2218, 0.0
        %v2251 = vmax.f32 %v2219, 0.0
        %v2252 = vld [vmem:[%s5] sm:$0xff]
        %v2253 = vld [vmem:[%s5 + $0x8] sm:$0xff]
        %v2254 = vld [vmem:[%s5 + $0x10] sm:$0xff]
        %v2255 = vld [vmem:[%s5 + $0x18] sm:$0xff]
        %v2256 = vld [vmem:[%s5 + $0x20] sm:$0xff]
        %v2257 = vld [vmem:[%s5 + $0x28] sm:$0xff]
        %v2258 = vld [vmem:[%s5 + $0x30] sm:$0xff]
        %v2259 = vld [vmem:[%s5 + $0x38] sm:$0xff]
        %v2260 = vld [vmem:[%s5 + $0x40] sm:$0xff]
        %v2261 = vld [vmem:[%s5 + $0x48] sm:$0xff]
        %v2262 = vld [vmem:[%s5 + $0x50] sm:$0xff]
        %v2263 = vld [vmem:[%s5 + $0x58] sm:$0xff]
        %v2264 = vld [vmem:[%s5 + $0x60] sm:$0xff]
        %v2265 = vld [vmem:[%s5 + $0x68] sm:$0xff]
        %v2266 = vld [vmem:[%s5 + $0x70] sm:$0xff]
        %v2267 = vld [vmem:[%s5 + $0x78] sm:$0xff]
        %v2268 = vld [vmem:[%s6] sm:$0x3]
        %v2270 = vlaneseq
        %v2271 = vshrl.u32 %v2270, 7
        %v2272 = vsub.s32 0, %v2271
        %v2273 = vrot.slane %v2268, %v2272
        %v2274 = vlaneseq
        %v2275 = vshrl.u32 %v2274, 7
        %v2276 = vsub.s32 1, %v2275
        %v2277 = vrot.slane %v2268, %v2276
        %v2281 = vsel %vm711, %v2220, 0
        %v2284 = vsel %vm711, %v2221, 0
        %v2287 = vsel %vm711, %v2222, 0
        %v2290 = vsel %vm711, %v2223, 0
        %v2293 = vsel %vm711, %v2224, 0
        %v2296 = vsel %vm711, %v2225, 0
        %v2299 = vsel %vm711, %v2226, 0
        %v2302 = vsel %vm711, %v2227, 0
        %v2305 = vsel %vm711, %v2228, 0
        %v2308 = vsel %vm711, %v2229, 0
        %v2311 = vsel %vm711, %v2230, 0
        %v2314 = vsel %vm711, %v2231, 0
        %v2317 = vsel %vm711, %v2232, 0
        %v2320 = vsel %vm711, %v2233, 0
        %v2323 = vsel %vm711, %v2234, 0
        %v2326 = vsel %vm711, %v2235, 0
        %v2329 = vsel %vm711, %v2236, 0
        %v2332 = vsel %vm711, %v2237, 0
        %v2335 = vsel %vm711, %v2238, 0
        %v2338 = vsel %vm711, %v2239, 0
        %v2341 = vsel %vm711, %v2240, 0
        %v2344 = vsel %vm711, %v2241, 0
        %v2347 = vsel %vm711, %v2242, 0
        %v2350 = vsel %vm711, %v2243, 0
        %v2353 = vsel %vm711, %v2244, 0
        %v2356 = vsel %vm711, %v2245, 0
        %v2359 = vsel %vm711, %v2246, 0
        %v2362 = vsel %vm711, %v2247, 0
        %v2365 = vsel %vm711, %v2248, 0
        %v2368 = vsel %vm711, %v2249, 0
        %v2371 = vsel %vm711, %v2250, 0
        %v2374 = vsel %vm711, %v2251, 0
        %2376 = vmatprep.subr.mxu0 0.0
        %2377 = vmatpush1.msra.mxu0 0.0
        %2378 = vmatprep.subr.mxu0 0.0
        %2379 = vmatpush1.msra.mxu0 0.0
        %2380 = vmatprep.subr.mxu0 0.0
        %2381 = vmatpush1.msra.mxu0 0.0
        %2382 = vmatprep.subr.mxu0 0.0
        %2383 = vmatpush1.msra.mxu0 0.0
        %2384 = vmatprep.subr.mxu0 0.0
        %2385 = vmatpush1.msra.mxu0 0.0
        %2386 = vmatprep.subr.mxu0 0.0
        %2387 = vmatpush1.msra.mxu0 0.0
        %2388 = vmatprep.subr.mxu0 0.0
        %2389 = vmatpush1.msra.mxu0 0.0
        %2390 = vmatprep.subr.mxu0 0.0
        %2391 = vmatpush1.msra.mxu0 0.0
        %2392 = vmatprep.subr.mxu0 %v2267
        %2393 = vmatpush1.msra.mxu0 %v2266
        %2394 = vmatprep.subr.mxu0 %v2265
        %2395 = vmatpush1.msra.mxu0 %v2264
        %2396 = vmatprep.subr.mxu0 %v2263
        %2397 = vmatpush1.msra.mxu0 %v2262
        %2398 = vmatprep.subr.mxu0 %v2261
        %2399 = vmatpush1.msra.mxu0 %v2260
        %2400 = vmatprep.subr.mxu0 %v2259
        %2401 = vmatpush1.msra.mxu0 %v2258
        %2402 = vmatprep.subr.mxu0 %v2257
        %2403 = vmatpush1.msra.mxu0 %v2256
        %2404 = vmatprep.subr.mxu0 %v2255
        %2405 = vmatpush1.msra.mxu0 %v2254
        %2406 = vmatprep.subr.mxu0 %v2253
        %2407 = vmatpush1.msra.mxu0 %v2252
        %2408 = vmatprep.subr.mxu0 0.0
        %2409 = vmatpush2.msra.mxu0 0.0
        %2410 = vmatprep.subr.mxu0 0.0
        %2411 = vmatpush2.msra.mxu0 0.0
        %2412 = vmatprep.subr.mxu0 0.0
        %2413 = vmatpush2.msra.mxu0 0.0
        %2414 = vmatprep.subr.mxu0 0.0
        %2415 = vmatpush2.msra.mxu0 0.0
        %2416 = vmatprep.subr.mxu0 0.0
        %2417 = vmatpush2.msra.mxu0 0.0
        %2418 = vmatprep.subr.mxu0 0.0
        %2419 = vmatpush2.msra.mxu0 0.0
        %2420 = vmatprep.subr.mxu0 0.0
        %2421 = vmatpush2.msra.mxu0 0.0
        %2422 = vmatprep.subr.mxu0 0.0
        %2423 = vmatpush2.msra.mxu0 0.0
        %2424 = vmatprep.subr.mxu0 0.0
        %2425 = vmatpush2.msra.mxu0 0.0
        %2426 = vmatprep.subr.mxu0 0.0
        %2427 = vmatpush2.msra.mxu0 0.0
        %2428 = vmatprep.subr.mxu0 0.0
        %2429 = vmatpush2.msra.mxu0 0.0
        %2430 = vmatprep.subr.mxu0 0.0
        %2431 = vmatpush2.msra.mxu0 0.0
        %2432 = vmatprep.subr.mxu0 0.0
        %2433 = vmatpush2.msra.mxu0 0.0
        %2434 = vmatprep.subr.mxu0 0.0
        %2435 = vmatpush2.msra.mxu0 0.0
        %2436 = vmatprep.subr.mxu0 0.0
        %2437 = vmatpush2.msra.mxu0 0.0
        %2438 = vmatprep.subr.mxu0 0.0
        %2439 = vmatpush2.msra.mxu0 0.0
        %2440 = vmatprep.mubr.f32.mxu0 0.0
        %2441 = vmatmul.mubr.f32.gmra.mxu0 %v2281
        %v2442 = vpop.f32.mrf.mxu0
        %v2443 = vadd.f32 %v2273, %v2442
        %v2444 = vpop.f32.mrf.mxu0
        %v2445 = vadd.f32 %v2277, %v2444
        %2446 = vmatprep.mubr.f32.mxu0 0.0
        %2447 = vmatmul.mubr.f32.gmra.mxu0 %v2284
        %v2448 = vpop.f32.mrf.mxu0
        %v2449 = vadd.f32 %v2273, %v2448
        %v2450 = vpop.f32.mrf.mxu0
        %v2451 = vadd.f32 %v2277, %v2450
        %2452 = vmatprep.mubr.f32.mxu0 0.0
        %2453 = vmatmul.mubr.f32.gmra.mxu0 %v2287
        %v2454 = vpop.f32.mrf.mxu0
        %v2455 = vadd.f32 %v2273, %v2454
        %v2456 = vpop.f32.mrf.mxu0
        %v2457 = vadd.f32 %v2277, %v2456
        %2458 = vmatprep.mubr.f32.mxu0 0.0
        %2459 = vmatmul.mubr.f32.gmra.mxu0 %v2290
        %v2460 = vpop.f32.mrf.mxu0
        %v2461 = vadd.f32 %v2273, %v2460
        %v2462 = vpop.f32.mrf.mxu0
        %v2463 = vadd.f32 %v2277, %v2462
        %2464 = vmatprep.mubr.f32.mxu0 0.0
        %2465 = vmatmul.mubr.f32.gmra.mxu0 %v2293
        %v2466 = vpop.f32.mrf.mxu0
        %v2467 = vadd.f32 %v2273, %v2466
        %v2468 = vpop.f32.mrf.mxu0
        %v2469 = vadd.f32 %v2277, %v2468
        %2470 = vmatprep.mubr.f32.mxu0 0.0
        %2471 = vmatmul.mubr.f32.gmra.mxu0 %v2296
        %v2472 = vpop.f32.mrf.mxu0
        %v2473 = vadd.f32 %v2273, %v2472
        %v2474 = vpop.f32.mrf.mxu0
        %v2475 = vadd.f32 %v2277, %v2474
        %2476 = vmatprep.mubr.f32.mxu0 0.0
        %2477 = vmatmul.mubr.f32.gmra.mxu0 %v2299
        %v2478 = vpop.f32.mrf.mxu0
        %v2479 = vadd.f32 %v2273, %v2478
        %v2480 = vpop.f32.mrf.mxu0
        %v2481 = vadd.f32 %v2277, %v2480
        %2482 = vmatprep.mubr.f32.mxu0 0.0
        %2483 = vmatmul.mubr.f32.gmra.mxu0 %v2302
        %v2484 = vpop.f32.mrf.mxu0
        %v2485 = vadd.f32 %v2273, %v2484
        %v2486 = vpop.f32.mrf.mxu0
        %v2487 = vadd.f32 %v2277, %v2486
        %2488 = vmatprep.mubr.f32.mxu0 0.0
        %2489 = vmatmul.mubr.f32.gmra.mxu0 %v2305
        %v2490 = vpop.f32.mrf.mxu0
        %v2491 = vadd.f32 %v2273, %v2490
        %v2492 = vpop.f32.mrf.mxu0
        %v2493 = vadd.f32 %v2277, %v2492
        %2494 = vmatprep.mubr.f32.mxu0 0.0
        %2495 = vmatmul.mubr.f32.gmra.mxu0 %v2308
        %v2496 = vpop.f32.mrf.mxu0
        %v2497 = vadd.f32 %v2273, %v2496
        %v2498 = vpop.f32.mrf.mxu0
        %v2499 = vadd.f32 %v2277, %v2498
        %2500 = vmatprep.mubr.f32.mxu0 0.0
        %2501 = vmatmul.mubr.f32.gmra.mxu0 %v2311
        %v2502 = vpop.f32.mrf.mxu0
        %v2503 = vadd.f32 %v2273, %v2502
        %v2504 = vpop.f32.mrf.mxu0
        %v2505 = vadd.f32 %v2277, %v2504
        %2506 = vmatprep.mubr.f32.mxu0 0.0
        %2507 = vmatmul.mubr.f32.gmra.mxu0 %v2314
        %v2508 = vpop.f32.mrf.mxu0
        %v2509 = vadd.f32 %v2273, %v2508
        %v2510 = vpop.f32.mrf.mxu0
        %v2511 = vadd.f32 %v2277, %v2510
        %2512 = vmatprep.mubr.f32.mxu0 0.0
        %2513 = vmatmul.mubr.f32.gmra.mxu0 %v2317
        %v2514 = vpop.f32.mrf.mxu0
        %v2515 = vadd.f32 %v2273, %v2514
        %v2516 = vpop.f32.mrf.mxu0
        %v2517 = vadd.f32 %v2277, %v2516
        %2518 = vmatprep.mubr.f32.mxu0 0.0
        %2519 = vmatmul.mubr.f32.gmra.mxu0 %v2320
        %v2520 = vpop.f32.mrf.mxu0
        %v2521 = vadd.f32 %v2273, %v2520
        %v2522 = vpop.f32.mrf.mxu0
        %v2523 = vadd.f32 %v2277, %v2522
        %2524 = vmatprep.mubr.f32.mxu0 0.0
        %2525 = vmatmul.mubr.f32.gmra.mxu0 %v2323
        %v2526 = vpop.f32.mrf.mxu0
        %v2527 = vadd.f32 %v2273, %v2526
        %v2528 = vpop.f32.mrf.mxu0
        %v2529 = vadd.f32 %v2277, %v2528
        %2530 = vmatprep.mubr.f32.mxu0 0.0
        %2531 = vmatmul.mubr.f32.gmra.mxu0 %v2326
        %v2532 = vpop.f32.mrf.mxu0
        %v2533 = vadd.f32 %v2273, %v2532
        %v2534 = vpop.f32.mrf.mxu0
        %v2535 = vadd.f32 %v2277, %v2534
        %2536 = vmatprep.mubr.f32.mxu0 0.0
        %2537 = vmatmul.mubr.f32.gmra.mxu0 %v2329
        %v2538 = vpop.f32.mrf.mxu0
        %v2539 = vadd.f32 %v2273, %v2538
        %v2540 = vpop.f32.mrf.mxu0
        %v2541 = vadd.f32 %v2277, %v2540
        %2542 = vmatprep.mubr.f32.mxu0 0.0
        %2543 = vmatmul.mubr.f32.gmra.mxu0 %v2332
        %v2544 = vpop.f32.mrf.mxu0
        %v2545 = vadd.f32 %v2273, %v2544
        %v2546 = vpop.f32.mrf.mxu0
        %v2547 = vadd.f32 %v2277, %v2546
        %2548 = vmatprep.mubr.f32.mxu0 0.0
        %2549 = vmatmul.mubr.f32.gmra.mxu0 %v2335
        %v2550 = vpop.f32.mrf.mxu0
        %v2551 = vadd.f32 %v2273, %v2550
        %v2552 = vpop.f32.mrf.mxu0
        %v2553 = vadd.f32 %v2277, %v2552
        %2554 = vmatprep.mubr.f32.mxu0 0.0
        %2555 = vmatmul.mubr.f32.gmra.mxu0 %v2338
        %v2556 = vpop.f32.mrf.mxu0
        %v2557 = vadd.f32 %v2273, %v2556
        %v2558 = vpop.f32.mrf.mxu0
        %v2559 = vadd.f32 %v2277, %v2558
        %2560 = vmatprep.mubr.f32.mxu0 0.0
        %2561 = vmatmul.mubr.f32.gmra.mxu0 %v2341
        %v2562 = vpop.f32.mrf.mxu0
        %v2563 = vadd.f32 %v2273, %v2562
        %v2564 = vpop.f32.mrf.mxu0
        %v2565 = vadd.f32 %v2277, %v2564
        %2566 = vmatprep.mubr.f32.mxu0 0.0
        %2567 = vmatmul.mubr.f32.gmra.mxu0 %v2344
        %v2568 = vpop.f32.mrf.mxu0
        %v2569 = vadd.f32 %v2273, %v2568
        %v2570 = vpop.f32.mrf.mxu0
        %v2571 = vadd.f32 %v2277, %v2570
        %2572 = vmatprep.mubr.f32.mxu0 0.0
        %2573 = vmatmul.mubr.f32.gmra.mxu0 %v2347
        %v2574 = vpop.f32.mrf.mxu0
        %v2575 = vadd.f32 %v2273, %v2574
        %v2576 = vpop.f32.mrf.mxu0
        %v2577 = vadd.f32 %v2277, %v2576
        %2578 = vmatprep.mubr.f32.mxu0 0.0
        %2579 = vmatmul.mubr.f32.gmra.mxu0 %v2350
        %v2580 = vpop.f32.mrf.mxu0
        %v2581 = vadd.f32 %v2273, %v2580
        %v2582 = vpop.f32.mrf.mxu0
        %v2583 = vadd.f32 %v2277, %v2582
        %2584 = vmatprep.mubr.f32.mxu0 0.0
        %2585 = vmatmul.mubr.f32.gmra.mxu0 %v2353
        %v2586 = vpop.f32.mrf.mxu0
        %v2587 = vadd.f32 %v2273, %v2586
        %v2588 = vpop.f32.mrf.mxu0
        %v2589 = vadd.f32 %v2277, %v2588
        %2590 = vmatprep.mubr.f32.mxu0 0.0
        %2591 = vmatmul.mubr.f32.gmra.mxu0 %v2356
        %v2592 = vpop.f32.mrf.mxu0
        %v2593 = vadd.f32 %v2273, %v2592
        %v2594 = vpop.f32.mrf.mxu0
        %v2595 = vadd.f32 %v2277, %v2594
        %2596 = vmatprep.mubr.f32.mxu0 0.0
        %2597 = vmatmul.mubr.f32.gmra.mxu0 %v2359
        %v2598 = vpop.f32.mrf.mxu0
        %v2599 = vadd.f32 %v2273, %v2598
        %v2600 = vpop.f32.mrf.mxu0
        %v2601 = vadd.f32 %v2277, %v2600
        %2602 = vmatprep.mubr.f32.mxu0 0.0
        %2603 = vmatmul.mubr.f32.gmra.mxu0 %v2362
        %v2604 = vpop.f32.mrf.mxu0
        %v2605 = vadd.f32 %v2273, %v2604
        %v2606 = vpop.f32.mrf.mxu0
        %v2607 = vadd.f32 %v2277, %v2606
        %2608 = vmatprep.mubr.f32.mxu0 0.0
        %2609 = vmatmul.mubr.f32.gmra.mxu0 %v2365
        %v2610 = vpop.f32.mrf.mxu0
        %v2611 = vadd.f32 %v2273, %v2610
        %v2612 = vpop.f32.mrf.mxu0
        %v2613 = vadd.f32 %v2277, %v2612
        %2614 = vmatprep.mubr.f32.mxu0 0.0
        %2615 = vmatmul.mubr.f32.gmra.mxu0 %v2368
        %v2616 = vpop.f32.mrf.mxu0
        %v2617 = vadd.f32 %v2273, %v2616
        %v2618 = vpop.f32.mrf.mxu0
        %v2619 = vadd.f32 %v2277, %v2618
        %2620 = vmatprep.mubr.f32.mxu0 0.0
        %2621 = vmatmul.mubr.f32.gmra.mxu0 %v2371
        %v2622 = vpop.f32.mrf.mxu0
        %v2623 = vadd.f32 %v2273, %v2622
        %v2624 = vpop.f32.mrf.mxu0
        %v2625 = vadd.f32 %v2277, %v2624
        %2626 = vmatprep.mubr.f32.mxu0 0.0
        %2627 = vmatmul.mubr.f32.gmra.mxu0 %v2374
        %v2628 = vpop.f32.mrf.mxu0
        %v2629 = vadd.f32 %v2273, %v2628
        %v2630 = vpop.f32.mrf.mxu0
        %v2631 = vadd.f32 %v2277, %v2630
        %2632 = vdwg.mxu0
        %v2633 = vadd.f32 %v2443, %v351
        %v2634 = vadd.f32 %v2445, %v352
        %v2635 = vadd.f32 %v2449, %v353
        %v2636 = vadd.f32 %v2451, %v354
        %v2637 = vadd.f32 %v2455, %v355
        %v2638 = vadd.f32 %v2457, %v356
        %v2639 = vadd.f32 %v2461, %v357
        %v2640 = vadd.f32 %v2463, %v358
        %v2641 = vadd.f32 %v2467, %v359
        %v2642 = vadd.f32 %v2469, %v360
        %v2643 = vadd.f32 %v2473, %v361
        %v2644 = vadd.f32 %v2475, %v362
        %v2645 = vadd.f32 %v2479, %v363
        %v2646 = vadd.f32 %v2481, %v364
        %v2647 = vadd.f32 %v2485, %v365
        %v2648 = vadd.f32 %v2487, %v366
        %v2649 = vadd.f32 %v2491, %v367
        %v2650 = vadd.f32 %v2493, %v368
        %v2651 = vadd.f32 %v2497, %v369
        %v2652 = vadd.f32 %v2499, %v370
        %v2653 = vadd.f32 %v2503, %v371
        %v2654 = vadd.f32 %v2505, %v372
        %v2655 = vadd.f32 %v2509, %v373
        %v2656 = vadd.f32 %v2511, %v374
        %v2657 = vadd.f32 %v2515, %v375
        %v2658 = vadd.f32 %v2517, %v376
        %v2659 = vadd.f32 %v2521, %v377
        %v2660 = vadd.f32 %v2523, %v378
        %v2661 = vadd.f32 %v2527, %v379
        %v2662 = vadd.f32 %v2529, %v380
        %v2663 = vadd.f32 %v2533, %v381
        %v2664 = vadd.f32 %v2535, %v382
        %v2665 = vadd.f32 %v2539, %v383
        %v2666 = vadd.f32 %v2541, %v384
        %v2667 = vadd.f32 %v2545, %v385
        %v2668 = vadd.f32 %v2547, %v386
        %v2669 = vadd.f32 %v2551, %v387
        %v2670 = vadd.f32 %v2553, %v388
        %v2671 = vadd.f32 %v2557, %v389
        %v2672 = vadd.f32 %v2559, %v390
        %v2673 = vadd.f32 %v2563, %v391
        %v2674 = vadd.f32 %v2565, %v392
        %v2675 = vadd.f32 %v2569, %v393
        %v2676 = vadd.f32 %v2571, %v394
        %v2677 = vadd.f32 %v2575, %v395
        %v2678 = vadd.f32 %v2577, %v396
        %v2679 = vadd.f32 %v2581, %v397
        %v2680 = vadd.f32 %v2583, %v398
        %v2681 = vadd.f32 %v2587, %v399
        %v2682 = vadd.f32 %v2589, %v400
        %v2683 = vadd.f32 %v2593, %v401
        %v2684 = vadd.f32 %v2595, %v402
        %v2685 = vadd.f32 %v2599, %v403
        %v2686 = vadd.f32 %v2601, %v404
        %v2687 = vadd.f32 %v2605, %v405
        %v2688 = vadd.f32 %v2607, %v406
        %v2689 = vadd.f32 %v2611, %v407
        %v2690 = vadd.f32 %v2613, %v408
        %v2691 = vadd.f32 %v2617, %v409
        %v2692 = vadd.f32 %v2619, %v410
        %v2693 = vadd.f32 %v2623, %v411
        %v2694 = vadd.f32 %v2625, %v412
        %v2695 = vadd.f32 %v2629, %v413
        %v2696 = vadd.f32 %v2631, %v414
        %v2697 = vmax.f32 %v2633, 0.0
        %v2698 = vmax.f32 %v2634, 0.0
        %v2699 = vmax.f32 %v2635, 0.0
        %v2700 = vmax.f32 %v2636, 0.0
        %v2701 = vmax.f32 %v2637, 0.0
        %v2702 = vmax.f32 %v2638, 0.0
        %v2703 = vmax.f32 %v2639, 0.0
        %v2704 = vmax.f32 %v2640, 0.0
        %v2705 = vmax.f32 %v2641, 0.0
        %v2706 = vmax.f32 %v2642, 0.0
        %v2707 = vmax.f32 %v2643, 0.0
        %v2708 = vmax.f32 %v2644, 0.0
        %v2709 = vmax.f32 %v2645, 0.0
        %v2710 = vmax.f32 %v2646, 0.0
        %v2711 = vmax.f32 %v2647, 0.0
        %v2712 = vmax.f32 %v2648, 0.0
        %v2713 = vmax.f32 %v2649, 0.0
        %v2714 = vmax.f32 %v2650, 0.0
        %v2715 = vmax.f32 %v2651, 0.0
        %v2716 = vmax.f32 %v2652, 0.0
        %v2717 = vmax.f32 %v2653, 0.0
        %v2718 = vmax.f32 %v2654, 0.0
        %v2719 = vmax.f32 %v2655, 0.0
        %v2720 = vmax.f32 %v2656, 0.0
        %v2721 = vmax.f32 %v2657, 0.0
        %v2722 = vmax.f32 %v2658, 0.0
        %v2723 = vmax.f32 %v2659, 0.0
        %v2724 = vmax.f32 %v2660, 0.0
        %v2725 = vmax.f32 %v2661, 0.0
        %v2726 = vmax.f32 %v2662, 0.0
        %v2727 = vmax.f32 %v2663, 0.0
        %v2728 = vmax.f32 %v2664, 0.0
        %v2729 = vmax.f32 %v2665, 0.0
        %v2730 = vmax.f32 %v2666, 0.0
        %v2731 = vmax.f32 %v2667, 0.0
        %v2732 = vmax.f32 %v2668, 0.0
        %v2733 = vmax.f32 %v2669, 0.0
        %v2734 = vmax.f32 %v2670, 0.0
        %v2735 = vmax.f32 %v2671, 0.0
        %v2736 = vmax.f32 %v2672, 0.0
        %v2737 = vmax.f32 %v2673, 0.0
        %v2738 = vmax.f32 %v2674, 0.0
        %v2739 = vmax.f32 %v2675, 0.0
        %v2740 = vmax.f32 %v2676, 0.0
        %v2741 = vmax.f32 %v2677, 0.0
        %v2742 = vmax.f32 %v2678, 0.0
        %v2743 = vmax.f32 %v2679, 0.0
        %v2744 = vmax.f32 %v2680, 0.0
        %v2745 = vmax.f32 %v2681, 0.0
        %v2746 = vmax.f32 %v2682, 0.0
        %v2747 = vmax.f32 %v2683, 0.0
        %v2748 = vmax.f32 %v2684, 0.0
        %v2749 = vmax.f32 %v2685, 0.0
        %v2750 = vmax.f32 %v2686, 0.0
        %v2751 = vmax.f32 %v2687, 0.0
        %v2752 = vmax.f32 %v2688, 0.0
        %v2753 = vmax.f32 %v2689, 0.0
        %v2754 = vmax.f32 %v2690, 0.0
        %v2755 = vmax.f32 %v2691, 0.0
        %v2756 = vmax.f32 %v2692, 0.0
        %v2757 = vmax.f32 %v2693, 0.0
        %v2758 = vmax.f32 %v2694, 0.0
        %v2759 = vmax.f32 %v2695, 0.0
        %v2760 = vmax.f32 %v2696, 0.0
        %2761 = vst [vmem:[%s350] sm:$0xff] %v2697
        %2762 = vst [vmem:[%s350 + $0x8] sm:$0xff] %v2698
        %2763 = vst [vmem:[%s350 + $0x10] sm:$0xff] %v2699
        %2764 = vst [vmem:[%s350 + $0x18] sm:$0xff] %v2700
        %2765 = vst [vmem:[%s350 + $0x20] sm:$0xff] %v2701
        %2766 = vst [vmem:[%s350 + $0x28] sm:$0xff] %v2702
        %2767 = vst [vmem:[%s350 + $0x30] sm:$0xff] %v2703
        %2768 = vst [vmem:[%s350 + $0x38] sm:$0xff] %v2704
        %2769 = vst [vmem:[%s350 + $0x40] sm:$0xff] %v2705
        %2770 = vst [vmem:[%s350 + $0x48] sm:$0xff] %v2706
        %2771 = vst [vmem:[%s350 + $0x50] sm:$0xff] %v2707
        %2772 = vst [vmem:[%s350 + $0x58] sm:$0xff] %v2708
        %2773 = vst [vmem:[%s350 + $0x60] sm:$0xff] %v2709
        %2774 = vst [vmem:[%s350 + $0x68] sm:$0xff] %v2710
        %2775 = vst [vmem:[%s350 + $0x70] sm:$0xff] %v2711
        %2776 = vst [vmem:[%s350 + $0x78] sm:$0xff] %v2712
        %2777 = vst [vmem:[%s350 + $0x80] sm:$0xff] %v2713
        %2778 = vst [vmem:[%s350 + $0x88] sm:$0xff] %v2714
        %2779 = vst [vmem:[%s350 + $0x90] sm:$0xff] %v2715
        %2780 = vst [vmem:[%s350 + $0x98] sm:$0xff] %v2716
        %2781 = vst [vmem:[%s350 + $0xa0] sm:$0xff] %v2717
        %2782 = vst [vmem:[%s350 + $0xa8] sm:$0xff] %v2718
        %2783 = vst [vmem:[%s350 + $0xb0] sm:$0xff] %v2719
        %2784 = vst [vmem:[%s350 + $0xb8] sm:$0xff] %v2720
        %2785 = vst [vmem:[%s350 + $0xc0] sm:$0xff] %v2721
        %2786 = vst [vmem:[%s350 + $0xc8] sm:$0xff] %v2722
        %2787 = vst [vmem:[%s350 + $0xd0] sm:$0xff] %v2723
        %2788 = vst [vmem:[%s350 + $0xd8] sm:$0xff] %v2724
        %2789 = vst [vmem:[%s350 + $0xe0] sm:$0xff] %v2725
        %2790 = vst [vmem:[%s350 + $0xe8] sm:$0xff] %v2726
        %2791 = vst [vmem:[%s350 + $0xf0] sm:$0xff] %v2727
        %2792 = vst [vmem:[%s350 + $0xf8] sm:$0xff] %v2728
        %2793 = vst [vmem:[%s350 + $0x100] sm:$0xff] %v2729
        %2794 = vst [vmem:[%s350 + $0x108] sm:$0xff] %v2730
        %2795 = vst [vmem:[%s350 + $0x110] sm:$0xff] %v2731
        %2796 = vst [vmem:[%s350 + $0x118] sm:$0xff] %v2732
        %2797 = vst [vmem:[%s350 + $0x120] sm:$0xff] %v2733
        %2798 = vst [vmem:[%s350 + $0x128] sm:$0xff] %v2734
        %2799 = vst [vmem:[%s350 + $0x130] sm:$0xff] %v2735
        %2800 = vst [vmem:[%s350 + $0x138] sm:$0xff] %v2736
        %2801 = vst [vmem:[%s350 + $0x140] sm:$0xff] %v2737
        %2802 = vst [vmem:[%s350 + $0x148] sm:$0xff] %v2738
        %2803 = vst [vmem:[%s350 + $0x150] sm:$0xff] %v2739
        %2804 = vst [vmem:[%s350 + $0x158] sm:$0xff] %v2740
        %2805 = vst [vmem:[%s350 + $0x160] sm:$0xff] %v2741
        %2806 = vst [vmem:[%s350 + $0x168] sm:$0xff] %v2742
        %2807 = vst [vmem:[%s350 + $0x170] sm:$0xff] %v2743
        %2808 = vst [vmem:[%s350 + $0x178] sm:$0xff] %v2744
        %2809 = vst [vmem:[%s350 + $0x180] sm:$0xff] %v2745
        %2810 = vst [vmem:[%s350 + $0x188] sm:$0xff] %v2746
        %2811 = vst [vmem:[%s350 + $0x190] sm:$0xff] %v2747
        %2812 = vst [vmem:[%s350 + $0x198] sm:$0xff] %v2748
        %2813 = vst [vmem:[%s350 + $0x1a0] sm:$0xff] %v2749
        %2814 = vst [vmem:[%s350 + $0x1a8] sm:$0xff] %v2750
        %2815 = vst [vmem:[%s350 + $0x1b0] sm:$0xff] %v2751
        %2816 = vst [vmem:[%s350 + $0x1b8] sm:$0xff] %v2752
        %2817 = vst [vmem:[%s350 + $0x1c0] sm:$0xff] %v2753
        %2818 = vst [vmem:[%s350 + $0x1c8] sm:$0xff] %v2754
        %2819 = vst [vmem:[%s350 + $0x1d0] sm:$0xff] %v2755
        %2820 = vst [vmem:[%s350 + $0x1d8] sm:$0xff] %v2756
        %2821 = vst [vmem:[%s350 + $0x1e0] sm:$0xff] %v2757
        %2822 = vst [vmem:[%s350 + $0x1e8] sm:$0xff] %v2758
        %2823 = vst [vmem:[%s350 + $0x1f0] sm:$0xff] %v2759
        %2824 = vst [vmem:[%s350 + $0x1f8] sm:$0xff] %v2760
        %s2825 = sand.u32 %s228, 1
        %s2826 = scalar_lea.sflag [#allocation5], %s2825
        %s2827 = sand.u32 %s228, 1
        %s2828 = smul.addr %s2827, 512
        %s2829 = scalar_lea.vmem [#allocation6], %s2828
        // Predicated region
        $region61: #{tpu_custom_call.1} parent=55 // pred_check
          %p2830 = pneg %p238
        $region62: #{tpu_custom_call.1} parent=55 // pred_check_branch
          %2832 = sbr.rel (%p2830) target = $region64
        $region63: #{tpu_custom_call.1} parent=55 // pred_region
          %s2834 = ssub.s32 8192, 8192
          %2835 = vsyncadd %s2826, %s2834
          %s2836 = smul.addr %s26, 64
          %s2837 = smul.addr %s2836, 128
          %s2838 = scalar_lea.hbm %s9, %s2837
          %s2839 = sshll.u32 %s2829, 4
          %s2840 = int_to_ptr.vmem [resolvable:$true] %s2839
          %2845 = dma.vmem_to_hbm [thread:$0]  %s2840, 8192, %s2838, %s2826, 256, 256, 16
        $region64: #{tpu_custom_call.1} parent=55 // pred_fallthru
          _
      $region56: #{tpu_custom_call.1} parent=5 // pred_fallthru
        _
      %p2846 = scmp.le.s32.totalorder 2, %s21
      // Predicated region
      $region65: #{tpu_custom_call.1} parent=5 // pred_check
        %p2847 = pneg %p2846
      $region66: #{tpu_custom_call.1} parent=5 // pred_check_branch
        %2849 = sbr.rel (%p2847) target = $region68
      $region67: #{tpu_custom_call.1} parent=5 // pred_region
        %s2850 = ssub.s32 %s21, 2
        // Predicated region
        $region69: #{tpu_custom_call.1} parent=67 // pred_check
          %p2851 = pneg %p244
        $region70: #{tpu_custom_call.1} parent=67 // pred_check_branch
          %2853 = sbr.rel (%p2851) target = $region72
        $region71: #{tpu_custom_call.1} parent=67 // pred_region
          %s2854 = sand.u32 %s229, 1
          %s2855 = scalar_lea.sflag [#allocation5], %s2854
          %s2856 = sand.u32 %s229, 1
          %s2857 = smul.addr %s2856, 512
          %s2858 = scalar_lea.vmem [#allocation6], %s2857
          %2859 = dma.done %s2855, 8192
        $region72: #{tpu_custom_call.1} parent=67 // pred_fallthru
          _
      $region68: #{tpu_custom_call.1} parent=5 // pred_fallthru
        _
    $region6: #{tpu_custom_call.1} parent=1 // loop_footer
      %s25 = sadd.s32 1, %s21
    $region7: #{tpu_custom_call.1} parent=1 // loop_footer_branch
      %20 = sbr.rel target = $region3
    $region8: #{tpu_custom_call.1} parent=1 // loop_exit
      _
    %2860 = vsyncpa [#allocation4], 1
    %s2861 = scalar_lea.sflag [#allocation4], 1
    %2862 = vsyncpa %s2861, 1
    %2863 = vsyncpa [#allocation5], 1
    %s2864 = scalar_lea.sflag [#allocation5], 1
    %2865 = vsyncpa %s2864, 1

</llo_original>
